<compile_context>
chip_gen: v7x
topology: tpu7x:2x2x1
jax: 0.10.0
libtpu: 0.0.40
codegen_flags: <defaults>
</compile_context>

<pallas_src>
import functools
import math

import jax
import jax.numpy as jnp
from jax.experimental import pallas as pl
from jax.experimental.pallas import tpu as pltpu

LANE = 128  # TPU vreg lane width


# ----------------------------------------------------------------------------
# Fused Pallas kernel:
#   out = maybe_relu(x @ w + b  [+ residual  |  + dx @ dw + db])
# ----------------------------------------------------------------------------
def _fused_kernel(*refs, apply_relu, res_mode):
    if res_mode == "matmul":        # residual = fused 1x1 downsample conv + BN
        x_ref, w_ref, b_ref, dx_ref, dw_ref, db_ref, o_ref = refs
    elif res_mode == "add":         # residual = identity
        x_ref, w_ref, b_ref, r_ref, o_ref = refs
    else:                           # no residual
        x_ref, w_ref, b_ref, o_ref = refs

    acc = jnp.dot(x_ref[...], w_ref[...], preferred_element_type=jnp.float32)
    acc = acc + b_ref[...]
    if res_mode == "matmul":
        acc = acc + jnp.dot(dx_ref[...], dw_ref[...],
                            preferred_element_type=jnp.float32)
        acc = acc + db_ref[...]
    elif res_mode == "add":
        acc = acc + r_ref[...].astype(jnp.float32)
    if apply_relu:
        acc = jnp.maximum(acc, 0.0)
    o_ref[...] = acc.astype(o_ref.dtype)


def _round_up(a, b):
    return (a + b - 1) // b * b


def fused_matmul(x, w, bias, *, residual=None, ds_x=None, ds_w=None,
                 ds_bias=None, apply_relu=False, out_dtype=jnp.float32,
                 block_m=256):
    """x: [M,K] patches, w: [K,N] (BN scale folded), bias: [N].
    Optional identity residual [M,N] or fused 1x1-downsample (ds_x/ds_w/ds_bias).
    Tiled over M with a parallel grid; bf16 operands, f32 accumulation.
    Output-channel axis is zero-padded to a multiple of 128 lanes so stores are
    unmasked; caller gets the [:M, :N] slice back."""
    M, K = x.shape
    K2, N = w.shape
    assert K == K2
    if ds_x is not None:
        res_mode = "matmul"
    elif residual is not None:
        res_mode = "add"
    else:
        res_mode = "none"

    # M tile: multiple of 8 sublanes.  256 fits easily in VMEM at these K/N;
    # push toward 512-1024 on v5e/v6e for bigger problems.
    bm = min(block_m, _round_up(M, 8))
    m_pad = _round_up(M, bm)
    n_pad = _round_up(N, LANE)          # lane-dense output columns

    def pad_rows(a):
        return a if a.shape[0] == m_pad else jnp.pad(
            a, ((0, m_pad - a.shape[0]), (0, 0)))

    def pad_cols(a):
        return a if a.shape[1] == n_pad else jnp.pad(
            a, ((0, 0), (0, n_pad - a.shape[1])))

    args = [pad_rows(x).astype(jnp.bfloat16),
            pad_cols(w).astype(jnp.bfloat16),
            pad_cols(bias.reshape(1, N)).astype(jnp.float32)]
    in_specs = [pl.BlockSpec((bm, K), lambda i: (i, 0)),
                pl.BlockSpec((K, n_pad), lambda i: (0, 0)),
                pl.BlockSpec((1, n_pad), lambda i: (0, 0))]
    if res_mode == "matmul":
        Kd = ds_x.shape[1]
        args += [pad_rows(ds_x).astype(jnp.bfloat16),
                 pad_cols(ds_w).astype(jnp.bfloat16),
                 pad_cols(ds_bias.reshape(1, N)).astype(jnp.float32)]
        in_specs += [pl.BlockSpec((bm, Kd), lambda i: (i, 0)),
                     pl.BlockSpec((Kd, n_pad), lambda i: (0, 0)),
                     pl.BlockSpec((1, n_pad), lambda i: (0, 0))]
    elif res_mode == "add":
        args.append(pad_cols(pad_rows(residual)).astype(jnp.bfloat16))
        in_specs.append(pl.BlockSpec((bm, n_pad), lambda i: (i, 0)))

    out = pl.pallas_call(
        functools.partial(_fused_kernel, apply_relu=apply_relu,
                          res_mode=res_mode),
        out_shape=jax.ShapeDtypeStruct((m_pad, n_pad), out_dtype),
        grid=(m_pad // bm,),
        in_specs=in_specs,
        out_specs=pl.BlockSpec((bm, n_pad), lambda i: (i, 0)),
        compiler_params=pltpu.CompilerParams(
            dimension_semantics=("parallel",),
            vmem_limit_bytes=32 * 1024 * 1024),
    )(*args)
    return out[:M, :N]


# ----------------------------------------------------------------------------
# Plain-JAX glue: im2col (static strides), BN folding
# ----------------------------------------------------------------------------
def extract_patches(x, ksize, stride, padding):
    """x: [N,H,W,C] -> ([N*Ho*Wo, k*k*C], (N,Ho,Wo)); (ky,kx,cin) ordering
    matches HWIO weight flattening.  `stride`/`padding` must be Python ints."""
    n, h, w, c = x.shape
    if padding > 0:
        x = jnp.pad(x, ((0, 0), (padding, padding), (padding, padding), (0, 0)))
    ho = (h + 2 * padding - ksize) // stride + 1
    wo = (w + 2 * padding - ksize) // stride + 1
    cols = []
    for ky in range(ksize):
        for kx in range(ksize):
            cols.append(x[:, ky:ky + stride * ho:stride,
                          kx:kx + stride * wo:stride, :])
    patches = jnp.concatenate(cols, axis=-1)          # [N,Ho,Wo,k*k*C]
    return patches.reshape(n * ho * wo, ksize * ksize * c), (n, ho, wo)


def fold_bn(bn, eps=1e-5):
    scale = bn["gamma"] / jnp.sqrt(bn["var"] + eps)
    bias = bn["beta"] - bn["mean"] * scale
    return scale, bias


# ----------------------------------------------------------------------------
# BasicBlock forward (Pallas path).  stride / downsample presence are static.
# ----------------------------------------------------------------------------
def basic_block_forward(x, p, *, stride, block_m=256):
    n, h, w, cin = x.shape
    planes = p["conv1_w"].shape[-1]
    s1, b1 = fold_bn(p["bn1"])
    s2, b2 = fold_bn(p["bn2"])

    # conv1 + bn1 + relu  -> one fused pallas_call (bf16 intermediate)
    patches1, (_, ho, wo) = extract_patches(x, 3, stride, 1)
    w1 = p["conv1_w"].reshape(9 * cin, planes) * s1[None, :]
    out1 = fused_matmul(patches1, w1, b1, apply_relu=True,
                        out_dtype=jnp.bfloat16, block_m=block_m)
    out1 = out1.reshape(n, ho, wo, planes)

    # conv2 + bn2 + residual(+fused downsample) + relu -> one fused pallas_call
    patches2, _ = extract_patches(out1, 3, 1, 1)
    w2 = p["conv2_w"].reshape(9 * planes, planes) * s2[None, :]
    if "ds_w" in p:
        sd, bd = fold_bn(p["ds_bn"])
        xds = x[:, ::stride, ::stride, :].reshape(n * ho * wo, cin)
        wd = p["ds_w"].reshape(cin, planes) * sd[None, :]
        out2 = fused_matmul(patches2, w2, b2,
                            ds_x=xds, ds_w=wd, ds_bias=bd,
                            apply_relu=True, out_dtype=jnp.float32,
                            block_m=block_m)
    else:
        assert stride == 1 and cin == planes
        res = x.reshape(n * ho * wo, cin)
        out2 = fused_matmul(patches2, w2, b2, residual=res,
                            apply_relu=True, out_dtype=jnp.float32,
                            block_m=block_m)
    return out2.reshape(n, ho, wo, planes)


def forward(params_a, params_b, x_nchw):
    x = jnp.transpose(x_nchw, (0, 2, 3, 1)).astype(jnp.float32)   # NCHW->NHWC
    y = basic_block_forward(x, params_a, stride=1)                # no downsample
    y = basic_block_forward(y, params_b, stride=2)                # with downsample
    return jnp.transpose(y, (0, 3, 1, 2))                         # back to NCHW


# ----------------------------------------------------------------------------
# Pure-JAX reference (BatchNorm in eval mode, matching the kernel semantics)
# ----------------------------------------------------------------------------
def _conv_ref(x, w, stride, padding):
    return jax.lax.conv_general_dilated(
        x, w, window_strides=(stride, stride),
        padding=((padding, padding), (padding, padding)),
        dimension_numbers=("NHWC", "HWIO", "NHWC"))


def _bn_ref(y, bn, eps=1e-5):
    return (y - bn["mean"]) / jnp.sqrt(bn["var"] + eps) * bn["gamma"] + bn["beta"]


def basic_block_ref(x, p, *, stride):
    out = jax.nn.relu(_bn_ref(_conv_ref(x, p["conv1_w"], stride, 1), p["bn1"]))
    out = _bn_ref(_conv_ref(out, p["conv2_w"], 1, 1), p["bn2"])
    identity = x
    if "ds_w" in p:
        identity = _bn_ref(_conv_ref(x, p["ds_w"], stride, 0), p["ds_bn"])
    return jax.nn.relu(out + identity)


def forward_ref(params_a, params_b, x_nchw):
    x = jnp.transpose(x_nchw, (0, 2, 3, 1)).astype(jnp.float32)
    y = basic_block_ref(x, params_a, stride=1)
    y = basic_block_ref(y, params_b, stride=2)
    return jnp.transpose(y, (0, 3, 1, 2))


# ----------------------------------------------------------------------------
# Parameter init (conv: He-normal; BN: randomized eval-mode stats)
# ----------------------------------------------------------------------------
def init_conv(key, kh, kw, cin, cout):
    std = math.sqrt(2.0 / (kh * kw * cout))
    return std * jax.random.normal(key, (kh, kw, cin, cout), jnp.float32)


def init_bn(key, c):
    kg, kb, km, kv = jax.random.split(key, 4)
    return {"gamma": 1.0 + 0.2 * jax.random.normal(kg, (c,), jnp.float32),
            "beta": 0.1 * jax.random.normal(kb, (c,), jnp.float32),
            "mean": 0.1 * jax.random.normal(km, (c,), jnp.float32),
            "var": 1.0 + 0.2 * jax.random.uniform(kv, (c,), jnp.float32)}


def init_basic_block(key, inplanes, planes, has_downsample):
    k1, k2, k3, kb1, kb2, kb3 = jax.random.split(key, 6)
    p = {"conv1_w": init_conv(k1, 3, 3, inplanes, planes),
         "bn1": init_bn(kb1, planes),
         "conv2_w": init_conv(k2, 3, 3, planes, planes),
         "bn2": init_bn(kb2, planes)}
    if has_downsample:
        p["ds_w"] = init_conv(k3, 1, 1, inplanes, planes)
        p["ds_bn"] = init_bn(kb3, planes)
    return p


# ----------------------------------------------------------------------------
if __name__ == "__main__":
    key = jax.random.PRNGKey(0)
    k_a, k_b, k_x = jax.random.split(key, 3)

    # Block A: 16 -> 16, stride 1 (identity residual path).
    params_a = init_basic_block(k_a, 16, 16, has_downsample=False)
    # Block B: 16 -> 32, stride 2 (1x1-conv + BN downsample path).
    params_b = init_basic_block(k_b, 16, 32, has_downsample=True)

    x = jax.random.normal(k_x, (2, 16, 16, 16), jnp.float32)   # NCHW like PyTorch

    y = jax.block_until_ready(jax.jit(forward)(params_a, params_b, x))
    assert y.shape == (2, 32, 8, 8)
    assert bool(jnp.all(jnp.isfinite(y)))

    # Check against the pure-JAX f32 reference (bf16 matmul operands => loose tol).
    y_ref = forward_ref(params_a, params_b, x)
    err = float(jnp.max(jnp.abs(y - y_ref)))
    ref_scale = float(jnp.max(jnp.abs(y_ref)))
    assert err <= 5e-2 * (1.0 + ref_scale), (err, ref_scale)

    print("KERNEL_OK")
</pallas_src>

<mosaic_0001>
module attributes {stable_mosaic.version = 11 : i64} {
  func.func @_fused_kernel(%arg0: i32, %arg1: memref<256x144xbf16, #tpu.memory_space<vmem>>, %arg2: memref<144x128xbf16, #tpu.memory_space<vmem>>, %arg3: memref<1x128xf32, #tpu.memory_space<vmem>>, %arg4: memref<256x128xbf16, #tpu.memory_space<vmem>>) attributes {dimension_semantics = [#tpu.dimension_semantics<parallel>], iteration_bounds = array<i64: 2>, scalar_prefetch = 0 : i64, scratch_operands = 0 : i64, tpu.core_type = #tpu.core_type<tc>, window_params = [{transform_indices = @transform_0, window_bounds = array<i64: 256, 144>}, {pipeline_mode = #tpu.pipeline_mode<synchronous>, transform_indices = @transform_1, window_bounds = array<i64: 144, 128>}, {pipeline_mode = #tpu.pipeline_mode<synchronous>, transform_indices = @transform_2, window_bounds = array<i64: 1, 128>}, {transform_indices = @transform_3, window_bounds = array<i64: 256, 128>}]} {
    %c0 = arith.constant 0 : index
    %c0_0 = arith.constant 0 : index
    %0 = vector.load %arg1[%c0, %c0_0] : memref<256x144xbf16, #tpu.memory_space<vmem>>, vector<256x144xbf16>
    %c0_1 = arith.constant 0 : index
    %c0_2 = arith.constant 0 : index
    %1 = vector.load %arg2[%c0_1, %c0_2] : memref<144x128xbf16, #tpu.memory_space<vmem>>, vector<144x128xbf16>
    %cst = arith.constant dense<0.000000e+00> : vector<256x128xf32>
    %2 = tpu.matmul %0, %1, %cst {dimension_numbers = #tpu.dot_dimension_numbers<[1], [0], [0], [1], [0, 0, 1, 1], [], []>} : vector<256x144xbf16>, vector<144x128xbf16>, vector<256x128xf32> -> vector<256x128xf32>
    %c0_3 = arith.constant 0 : index
    %c0_4 = arith.constant 0 : index
    %3 = vector.load %arg3[%c0_3, %c0_4] : memref<1x128xf32, #tpu.memory_space<vmem>>, vector<1x128xf32>
    %4 = vector.broadcast %3 : vector<1x128xf32> to vector<256x128xf32>
    %5 = arith.addf %2, %4 : vector<256x128xf32>
    %cst_5 = arith.constant 0.000000e+00 : f32
    %6 = vector.broadcast %cst_5 : f32 to vector<256x128xf32>
    %7 = arith.maximumf %5, %6 : vector<256x128xf32>
    %8 = arith.truncf %7 : vector<256x128xf32> to vector<256x128xbf16>
    %c0_6 = arith.constant 0 : index
    %c0_7 = arith.constant 0 : index
    %9 = vector.load %arg4[%c0_6, %c0_7] : memref<256x128xbf16, #tpu.memory_space<vmem>>, vector<256x128xbf16>
    tpu.vector_store %arg4[%c0_6, %c0_7], %8 {strides = array<i32>} : memref<256x128xbf16, #tpu.memory_space<vmem>>, vector<256x128xbf16>,
    return
  }
  func.func @transform_0(%arg0: i32) -> (i32, i32) {
    %c0_i32 = arith.constant 0 : i32
    %c0_i32_0 = arith.constant 0 : i32
    return %arg0, %c0_i32 : i32, i32
  }
  func.func @transform_1(%arg0: i32) -> (i32, i32) {
    %c0_i32 = arith.constant 0 : i32
    %c0_i32_0 = arith.constant 0 : i32
    %c0_i32_1 = arith.constant 0 : i32
    return %c0_i32, %c0_i32_0 : i32, i32
  }
  func.func @transform_2(%arg0: i32) -> (i32, i32) {
    %c0_i32 = arith.constant 0 : i32
    %c0_i32_0 = arith.constant 0 : i32
    %c0_i32_1 = arith.constant 0 : i32
    return %c0_i32, %c0_i32_0 : i32, i32
  }
  func.func @transform_3(%arg0: i32) -> (i32, i32) {
    %c0_i32 = arith.constant 0 : i32
    %c0_i32_0 = arith.constant 0 : i32
    return %arg0, %c0_i32 : i32, i32
  }
}

module attributes {stable_mosaic.version = 11 : i64} {
  func.func @_fused_kernel(%arg0: i32, %arg1: memref<256x144xbf16, #tpu.memory_space<vmem>>, %arg2: memref<144x128xbf16, #tpu.memory_space<vmem>>, %arg3: memref<1x128xf32, #tpu.memory_space<vmem>>, %arg4: memref<256x128xbf16, #tpu.memory_space<vmem>>, %arg5: memref<256x128xf32, #tpu.memory_space<vmem>>) attributes {dimension_semantics = [#tpu.dimension_semantics<parallel>], iteration_bounds = array<i64: 2>, scalar_prefetch = 0 : i64, scratch_operands = 0 : i64, tpu.core_type = #tpu.core_type<tc>, window_params = [{transform_indices = @transform_0, window_bounds = array<i64: 256, 144>}, {pipeline_mode = #tpu.pipeline_mode<synchronous>, transform_indices = @transform_1, window_bounds = array<i64: 144, 128>}, {pipeline_mode = #tpu.pipeline_mode<synchronous>, transform_indices = @transform_2, window_bounds = array<i64: 1, 128>}, {transform_indices = @transform_3, window_bounds = array<i64: 256, 128>}, {transform_indices = @transform_4, window_bounds = array<i64: 256, 128>}]} {
    %c0 = arith.constant 0 : index
    %c0_0 = arith.constant 0 : index
    %0 = vector.load %arg1[%c0, %c0_0] : memref<256x144xbf16, #tpu.memory_space<vmem>>, vector<256x144xbf16>
    %c0_1 = arith.constant 0 : index
    %c0_2 = arith.constant 0 : index
    %1 = vector.load %arg2[%c0_1, %c0_2] : memref<144x128xbf16, #tpu.memory_space<vmem>>, vector<144x128xbf16>
    %cst = arith.constant dense<0.000000e+00> : vector<256x128xf32>
    %2 = tpu.matmul %0, %1, %cst {dimension_numbers = #tpu.dot_dimension_numbers<[1], [0], [0], [1], [0, 0, 1, 1], [], []>} : vector<256x144xbf16>, vector<144x128xbf16>, vector<256x128xf32> -> vector<256x128xf32>
    %c0_3 = arith.constant 0 : index
    %c0_4 = arith.constant 0 : index
    %3 = vector.load %arg3[%c0_3, %c0_4] : memref<1x128xf32, #tpu.memory_space<vmem>>, vector<1x128xf32>
    %4 = vector.broadcast %3 : vector<1x128xf32> to vector<256x128xf32>
    %5 = arith.addf %2, %4 : vector<256x128xf32>
    %c0_5 = arith.constant 0 : index
    %c0_6 = arith.constant 0 : index
    %6 = vector.load %arg4[%c0_5, %c0_6] : memref<256x128xbf16, #tpu.memory_space<vmem>>, vector<256x128xbf16>
    %7 = arith.extf %6 : vector<256x128xbf16> to vector<256x128xf32>
    %8 = arith.addf %5, %7 : vector<256x128xf32>
    %cst_7 = arith.constant 0.000000e+00 : f32
    %9 = vector.broadcast %cst_7 : f32 to vector<256x128xf32>
    %10 = arith.maximumf %8, %9 : vector<256x128xf32>
    %c0_8 = arith.constant 0 : index
    %c0_9 = arith.constant 0 : index
    %11 = vector.load %arg5[%c0_8, %c0_9] : memref<256x128xf32, #tpu.memory_space<vmem>>, vector<256x128xf32>
    tpu.vector_store %arg5[%c0_8, %c0_9], %10 {strides = array<i32>} : memref<256x128xf32, #tpu.memory_space<vmem>>, vector<256x128xf32>,
    return
  }
  func.func @transform_0(%arg0: i32) -> (i32, i32) {
    %c0_i32 = arith.constant 0 : i32
    %c0_i32_0 = arith.constant 0 : i32
    return %arg0, %c0_i32 : i32, i32
  }
  func.func @transform_1(%arg0: i32) -> (i32, i32) {
    %c0_i32 = arith.constant 0 : i32
    %c0_i32_0 = arith.constant 0 : i32
    %c0_i32_1 = arith.constant 0 : i32
    return %c0_i32, %c0_i32_0 : i32, i32
  }
  func.func @transform_2(%arg0: i32) -> (i32, i32) {
    %c0_i32 = arith.constant 0 : i32
    %c0_i32_0 = arith.constant 0 : i32
    %c0_i32_1 = arith.constant 0 : i32
    return %c0_i32, %c0_i32_0 : i32, i32
  }
  func.func @transform_3(%arg0: i32) -> (i32, i32) {
    %c0_i32 = arith.constant 0 : i32
    %c0_i32_0 = arith.constant 0 : i32
    return %arg0, %c0_i32 : i32, i32
  }
  func.func @transform_4(%arg0: i32) -> (i32, i32) {
    %c0_i32 = arith.constant 0 : i32
    %c0_i32_0 = arith.constant 0 : i32
    return %arg0, %c0_i32 : i32, i32
  }
}

module attributes {stable_mosaic.version = 11 : i64} {
  func.func @_fused_kernel(%arg0: i32, %arg1: memref<128x144xbf16, #tpu.memory_space<vmem>>, %arg2: memref<144x128xbf16, #tpu.memory_space<vmem>>, %arg3: memref<1x128xf32, #tpu.memory_space<vmem>>, %arg4: memref<128x128xbf16, #tpu.memory_space<vmem>>) attributes {dimension_semantics = [#tpu.dimension_semantics<parallel>], iteration_bounds = array<i64: 1>, scalar_prefetch = 0 : i64, scratch_operands = 0 : i64, tpu.core_type = #tpu.core_type<tc>, window_params = [{transform_indices = @transform_0, window_bounds = array<i64: 128, 144>}, {pipeline_mode = #tpu.pipeline_mode<synchronous>, transform_indices = @transform_1, window_bounds = array<i64: 144, 128>}, {pipeline_mode = #tpu.pipeline_mode<synchronous>, transform_indices = @transform_2, window_bounds = array<i64: 1, 128>}, {transform_indices = @transform_3, window_bounds = array<i64: 128, 128>}]} {
    %c0 = arith.constant 0 : index
    %c0_0 = arith.constant 0 : index
    %0 = vector.load %arg1[%c0, %c0_0] : memref<128x144xbf16, #tpu.memory_space<vmem>>, vector<128x144xbf16>
    %c0_1 = arith.constant 0 : index
    %c0_2 = arith.constant 0 : index
    %1 = vector.load %arg2[%c0_1, %c0_2] : memref<144x128xbf16, #tpu.memory_space<vmem>>, vector<144x128xbf16>
    %cst = arith.constant dense<0.000000e+00> : vector<128x128xf32>
    %2 = tpu.matmul %0, %1, %cst {dimension_numbers = #tpu.dot_dimension_numbers<[1], [0], [0], [1], [0, 0, 1, 1], [], []>} : vector<128x144xbf16>, vector<144x128xbf16>, vector<128x128xf32> -> vector<128x128xf32>
    %c0_3 = arith.constant 0 : index
    %c0_4 = arith.constant 0 : index
    %3 = vector.load %arg3[%c0_3, %c0_4] : memref<1x128xf32, #tpu.memory_space<vmem>>, vector<1x128xf32>
    %4 = vector.broadcast %3 : vector<1x128xf32> to vector<128x128xf32>
    %5 = arith.addf %2, %4 : vector<128x128xf32>
    %cst_5 = arith.constant 0.000000e+00 : f32
    %6 = vector.broadcast %cst_5 : f32 to vector<128x128xf32>
    %7 = arith.maximumf %5, %6 : vector<128x128xf32>
    %8 = arith.truncf %7 : vector<128x128xf32> to vector<128x128xbf16>
    %c0_6 = arith.constant 0 : index
    %c0_7 = arith.constant 0 : index
    %9 = vector.load %arg4[%c0_6, %c0_7] : memref<128x128xbf16, #tpu.memory_space<vmem>>, vector<128x128xbf16>
    tpu.vector_store %arg4[%c0_6, %c0_7], %8 {strides = array<i32>} : memref<128x128xbf16, #tpu.memory_space<vmem>>, vector<128x128xbf16>,
    return
  }
  func.func @transform_0(%arg0: i32) -> (i32, i32) {
    %c0_i32 = arith.constant 0 : i32
    %c0_i32_0 = arith.constant 0 : i32
    return %arg0, %c0_i32 : i32, i32
  }
  func.func @transform_1(%arg0: i32) -> (i32, i32) {
    %c0_i32 = arith.constant 0 : i32
    %c0_i32_0 = arith.constant 0 : i32
    %c0_i32_1 = arith.constant 0 : i32
    return %c0_i32, %c0_i32_0 : i32, i32
  }
  func.func @transform_2(%arg0: i32) -> (i32, i32) {
    %c0_i32 = arith.constant 0 : i32
    %c0_i32_0 = arith.constant 0 : i32
    %c0_i32_1 = arith.constant 0 : i32
    return %c0_i32, %c0_i32_0 : i32, i32
  }
  func.func @transform_3(%arg0: i32) -> (i32, i32) {
    %c0_i32 = arith.constant 0 : i32
    %c0_i32_0 = arith.constant 0 : i32
    return %arg0, %c0_i32 : i32, i32
  }
}

module attributes {stable_mosaic.version = 11 : i64} {
  func.func @_fused_kernel(%arg0: i32, %arg1: memref<128x288xbf16, #tpu.memory_space<vmem>>, %arg2: memref<288x128xbf16, #tpu.memory_space<vmem>>, %arg3: memref<1x128xf32, #tpu.memory_space<vmem>>, %arg4: memref<128x16xbf16, #tpu.memory_space<vmem>>, %arg5: memref<16x128xbf16, #tpu.memory_space<vmem>>, %arg6: memref<1x128xf32, #tpu.memory_space<vmem>>, %arg7: memref<128x128xf32, #tpu.memory_space<vmem>>) attributes {dimension_semantics = [#tpu.dimension_semantics<parallel>], iteration_bounds = array<i64: 1>, scalar_prefetch = 0 : i64, scratch_operands = 0 : i64, tpu.core_type = #tpu.core_type<tc>, window_params = [{transform_indices = @transform_0, window_bounds = array<i64: 128, 288>}, {pipeline_mode = #tpu.pipeline_mode<synchronous>, transform_indices = @transform_1, window_bounds = array<i64: 288, 128>}, {pipeline_mode = #tpu.pipeline_mode<synchronous>, transform_indices = @transform_2, window_bounds = array<i64: 1, 128>}, {transform_indices = @transform_3, window_bounds = array<i64: 128, 16>}, {pipeline_mode = #tpu.pipeline_mode<synchronous>, transform_indices = @transform_4, window_bounds = array<i64: 16, 128>}, {pipeline_mode = #tpu.pipeline_mode<synchronous>, transform_indices = @transform_5, window_bounds = array<i64: 1, 128>}, {transform_indices = @transform_6, window_bounds = array<i64: 128, 128>}]} {
    %c0 = arith.constant 0 : index
    %c0_0 = arith.constant 0 : index
    %0 = vector.load %arg1[%c0, %c0_0] : memref<128x288xbf16, #tpu.memory_space<vmem>>, vector<128x288xbf16>
    %c0_1 = arith.constant 0 : index
    %c0_2 = arith.constant 0 : index
    %1 = vector.load %arg2[%c0_1, %c0_2] : memref<288x128xbf16, #tpu.memory_space<vmem>>, vector<288x128xbf16>
    %cst = arith.constant dense<0.000000e+00> : vector<128x128xf32>
    %2 = tpu.matmul %0, %1, %cst {dimension_numbers = #tpu.dot_dimension_numbers<[1], [0], [0], [1], [0, 0, 1, 1], [], []>} : vector<128x288xbf16>, vector<288x128xbf16>, vector<128x128xf32> -> vector<128x128xf32>
    %c0_3 = arith.constant 0 : index
    %c0_4 = arith.constant 0 : index
    %3 = vector.load %arg3[%c0_3, %c0_4] : memref<1x128xf32, #tpu.memory_space<vmem>>, vector<1x128xf32>
    %4 = vector.broadcast %3 : vector<1x128xf32> to vector<128x128xf32>
    %5 = arith.addf %2, %4 : vector<128x128xf32>
    %c0_5 = arith.constant 0 : index
    %c0_6 = arith.constant 0 : index
    %6 = vector.load %arg4[%c0_5, %c0_6] : memref<128x16xbf16, #tpu.memory_space<vmem>>, vector<128x16xbf16>
    %c0_7 = arith.constant 0 : index
    %c0_8 = arith.constant 0 : index
    %7 = vector.load %arg5[%c0_7, %c0_8] : memref<16x128xbf16, #tpu.memory_space<vmem>>, vector<16x128xbf16>
    %cst_9 = arith.constant dense<0.000000e+00> : vector<128x128xf32>
    %8 = tpu.matmul %6, %7, %cst_9 {dimension_numbers = #tpu.dot_dimension_numbers<[1], [0], [0], [1], [0, 0, 1, 1], [], []>} : vector<128x16xbf16>, vector<16x128xbf16>, vector<128x128xf32> -> vector<128x128xf32>
    %9 = arith.addf %5, %8 : vector<128x128xf32>
    %c0_10 = arith.constant 0 : index
    %c0_11 = arith.constant 0 : index
    %10 = vector.load %arg6[%c0_10, %c0_11] : memref<1x128xf32, #tpu.memory_space<vmem>>, vector<1x128xf32>
    %11 = vector.broadcast %10 : vector<1x128xf32> to vector<128x128xf32>
    %12 = arith.addf %9, %11 : vector<128x128xf32>
    %cst_12 = arith.constant 0.000000e+00 : f32
    %13 = vector.broadcast %cst_12 : f32 to vector<128x128xf32>
    %14 = arith.maximumf %12, %13 : vector<128x128xf32>
    %c0_13 = arith.constant 0 : index
    %c0_14 = arith.constant 0 : index
    %15 = vector.load %arg7[%c0_13, %c0_14] : memref<128x128xf32, #tpu.memory_space<vmem>>, vector<128x128xf32>
    tpu.vector_store %arg7[%c0_13, %c0_14], %14 {strides = array<i32>} : memref<128x128xf32, #tpu.memory_space<vmem>>, vector<128x128xf32>,
    return
  }
  func.func @transform_0(%arg0: i32) -> (i32, i32) {
    %c0_i32 = arith.constant 0 : i32
    %c0_i32_0 = arith.constant 0 : i32
    return %arg0, %c0_i32 : i32, i32
  }
  func.func @transform_1(%arg0: i32) -> (i32, i32) {
    %c0_i32 = arith.constant 0 : i32
    %c0_i32_0 = arith.constant 0 : i32
    %c0_i32_1 = arith.constant 0 : i32
    return %c0_i32, %c0_i32_0 : i32, i32
  }
  func.func @transform_2(%arg0: i32) -> (i32, i32) {
    %c0_i32 = arith.constant 0 : i32
    %c0_i32_0 = arith.constant 0 : i32
    %c0_i32_1 = arith.constant 0 : i32
    return %c0_i32, %c0_i32_0 : i32, i32
  }
  func.func @transform_3(%arg0: i32) -> (i32, i32) {
    %c0_i32 = arith.constant 0 : i32
    %c0_i32_0 = arith.constant 0 : i32
    return %arg0, %c0_i32 : i32, i32
  }
  func.func @transform_4(%arg0: i32) -> (i32, i32) {
    %c0_i32 = arith.constant 0 : i32
    %c0_i32_0 = arith.constant 0 : i32
    %c0_i32_1 = arith.constant 0 : i32
    return %c0_i32, %c0_i32_0 : i32, i32
  }
  func.func @transform_5(%arg0: i32) -> (i32, i32) {
    %c0_i32 = arith.constant 0 : i32
    %c0_i32_0 = arith.constant 0 : i32
    %c0_i32_1 = arith.constant 0 : i32
    return %c0_i32, %c0_i32_0 : i32, i32
  }
  func.func @transform_6(%arg0: i32) -> (i32, i32) {
    %c0_i32 = arith.constant 0 : i32
    %c0_i32_0 = arith.constant 0 : i32
    return %arg0, %c0_i32 : i32, i32
  }
}

</mosaic_0001>

<llo_original>
// kernel: forward.5
$region0: #{forward.5}
  #allocation0 [shape = 'u32[]', space=smem, size = 0x4, offset = 0x4, fixed_abs, tag = 'smem constant byte address 0x4 - core index']
  #allocation1 [shape = 'u32[144,128]{1,0:T(1,128)}', space=vmem, size = 0x12000, scoped, tag = 'internal scratch']
  %s0 = inlined_call_operand.vmem [shape: bf16[512,144], index: 0, kind: input, shape index: {}]
  %s1 = inlined_call_operand.vmem [shape: bf16[144,128], index: 1, kind: input, shape index: {}]
  %s2 = inlined_call_operand.vmem [shape: f32[1,128], index: 2, kind: input, shape index: {}]
  %s3 = inlined_call_operand.vmem [shape: bf16[512,128], index: 3, kind: input, shape index: {}]
  %s4 = inlined_call_operand.vmem [shape: f32[512,128], index: 4, kind: output, shape index: {}]
  %s5 = sld [smem:[#allocation0]]
  $region49: #{forward.5} parent=0
    _
  %s7 = ssub.s32 1, %s5
  %s8 = scalar_select 0, %s7, %s5
  loop: start=0, step=1, limit=4
  $region2: #{forward.5} parent=0 // loop_pre_header
    _
  $region3: #{forward.5} parent=0 // loop_header
    %s10 = sphi 0, %s14
    %p11 = scmp.ge.s32.totalorder %s10, 4
    %s20 = sphi 0, %s22
    %s23 = sphi 0, %s20
    %s24 = sphi 0, %s23
    %s40 = sphi 0, %s24
    %s44 = sphi 0, %s44
    %s46 = sphi 0, %s44
    %s47 = sphi 0, %s46
    %s61 = sphi 0, %s47
    %s65 = sphi 0, %s65
    %s67 = sphi 0, %s65
    %s68 = sphi 0, %s67
    %s82 = sphi 0, %s68
    %s88 = sphi 0, %s90
    %s91 = sphi 0, %s88
    %s92 = sphi 0, %s91
    %s108 = sphi 0, %s92
    %s114 = sphi 0, %s116
    %s117 = sphi 0, %s114
    %s118 = sphi 0, %s117
    %s134 = sphi 0, %s118
  $region4: #{forward.5} parent=0 // loop_header_branch
    %13 = sbr.rel (%p11) target = $region8
  $region5: #{forward.5} parent=0 // loop_body
    %s15 = ssub.s32 %s10, 1
    %s16 = ssub.s32 %s10, 2
    %s17 = sadd.s32 %s10, 1
    %s18 = ssub.s32 %s10, %s17
    %p19 = scmp.eq.s32.totalorder %s18, 0
    %s21 = sadd.s32 %s20, 1
    %s22 = scalar_select %p19, %s20, %s21
    %p25 = pneg %p19
    %p26 = scmp.eq.s32.totalorder %s10, 1
    %p27 = por %p25, %p26
    %p28 = scmp.ne.s32.totalorder %s20, %s23
    %p29 = scmp.eq.s32.totalorder %s10, 0
    %p30 = por %p28, %p29
    %p31 = scmp.ne.s32.totalorder %s20, %s23
    %p32 = scmp.eq.s32.totalorder %s15, 1
    %p33 = por %p31, %p32
    %p34 = scmp.ne.s32.totalorder %s23, %s24
    %p35 = scmp.eq.s32.totalorder %s15, 0
    %p36 = por %p34, %p35
    %p37 = scmp.ne.s32.totalorder %s23, %s24
    %p38 = scmp.eq.s32.totalorder %s16, 1
    %p39 = por %p37, %p38
    %p41 = scmp.ne.s32.totalorder %s24, %s40
    %p42 = scmp.eq.s32.totalorder %s16, 0
    %p43 = por %p41, %p42
    %s45 = sadd.s32 %s44, 1
    %p48 = scmp.eq.s32.totalorder %s10, 1
    %p49 = scmp.ne.s32.totalorder %s44, %s46
    %p50 = scmp.eq.s32.totalorder %s10, 0
    %p51 = por %p49, %p50
    %p52 = scmp.ne.s32.totalorder %s44, %s46
    %p53 = scmp.eq.s32.totalorder %s15, 1
    %p54 = por %p52, %p53
    %p55 = scmp.ne.s32.totalorder %s46, %s47
    %p56 = scmp.eq.s32.totalorder %s15, 0
    %p57 = por %p55, %p56
    %p58 = scmp.ne.s32.totalorder %s46, %s47
    %p59 = scmp.eq.s32.totalorder %s16, 1
    %p60 = por %p58, %p59
    %p62 = scmp.ne.s32.totalorder %s47, %s61
    %p63 = scmp.eq.s32.totalorder %s16, 0
    %p64 = por %p62, %p63
    %s66 = sadd.s32 %s65, 1
    %p69 = scmp.eq.s32.totalorder %s10, 1
    %p70 = scmp.ne.s32.totalorder %s65, %s67
    %p71 = scmp.eq.s32.totalorder %s10, 0
    %p72 = por %p70, %p71
    %p73 = scmp.ne.s32.totalorder %s65, %s67
    %p74 = scmp.eq.s32.totalorder %s15, 1
    %p75 = por %p73, %p74
    %p76 = scmp.ne.s32.totalorder %s67, %s68
    %p77 = scmp.eq.s32.totalorder %s15, 0
    %p78 = por %p76, %p77
    %p79 = scmp.ne.s32.totalorder %s67, %s68
    %p80 = scmp.eq.s32.totalorder %s16, 1
    %p81 = por %p79, %p80
    %p83 = scmp.ne.s32.totalorder %s68, %s82
    %p84 = scmp.eq.s32.totalorder %s16, 0
    %p85 = por %p83, %p84
    %s86 = ssub.s32 %s10, %s17
    %p87 = scmp.eq.s32.totalorder %s86, 0
    %s89 = sadd.s32 %s88, 1
    %s90 = scalar_select %p87, %s88, %s89
    %p93 = pneg %p87
    %p94 = scmp.eq.s32.totalorder %s10, 1
    %p95 = por %p93, %p94
    %p96 = scmp.ne.s32.totalorder %s88, %s91
    %p97 = scmp.eq.s32.totalorder %s10, 0
    %p98 = por %p96, %p97
    %p99 = scmp.ne.s32.totalorder %s88, %s91
    %p100 = scmp.eq.s32.totalorder %s15, 1
    %p101 = por %p99, %p100
    %p102 = scmp.ne.s32.totalorder %s91, %s92
    %p103 = scmp.eq.s32.totalorder %s15, 0
    %p104 = por %p102, %p103
    %p105 = scmp.ne.s32.totalorder %s91, %s92
    %p106 = scmp.eq.s32.totalorder %s16, 1
    %p107 = por %p105, %p106
    %p109 = scmp.ne.s32.totalorder %s92, %s108
    %p110 = scmp.eq.s32.totalorder %s16, 0
    %p111 = por %p109, %p110
    %s112 = ssub.s32 %s10, %s17
    %p113 = scmp.eq.s32.totalorder %s112, 0
    %s115 = sadd.s32 %s114, 1
    %s116 = scalar_select %p113, %s114, %s115
    %p119 = pneg %p113
    %p120 = scmp.eq.s32.totalorder %s10, 1
    %p121 = por %p119, %p120
    %p122 = scmp.ne.s32.totalorder %s114, %s117
    %p123 = scmp.eq.s32.totalorder %s10, 0
    %p124 = por %p122, %p123
    %p125 = scmp.ne.s32.totalorder %s114, %s117
    %p126 = scmp.eq.s32.totalorder %s15, 1
    %p127 = por %p125, %p126
    %p128 = scmp.ne.s32.totalorder %s117, %s118
    %p129 = scmp.eq.s32.totalorder %s15, 0
    %p130 = por %p128, %p129
    %p131 = scmp.ne.s32.totalorder %s117, %s118
    %p132 = scmp.eq.s32.totalorder %s16, 1
    %p133 = por %p131, %p132
    %p135 = scmp.ne.s32.totalorder %s118, %s134
    %p136 = scmp.eq.s32.totalorder %s16, 0
    %p137 = por %p135, %p136
    %p138 = scmp.le.s32.totalorder 1, %s10
    %p139 = scmp.lt.s32.totalorder %s10, 3
    %p140 = pnand %p138, %p139
    %p141 = pneg %p140
    // Predicated region
    $region9: #{forward.5} parent=5 // pred_check
      _
    $region10: #{forward.5} parent=5 // pred_check_branch
      %143 = sbr.rel (%p140) target = $region12
    $region11: #{forward.5} parent=5 // pred_region
      %s144 = ssub.s32 %s10, 1
      // Predicated region
      $region13: #{forward.5} parent=11 // pred_check
        %p145 = pneg %p57
      $region14: #{forward.5} parent=11 // pred_check_branch
        %147 = sbr.rel (%p145) target = $region16
      $region15: #{forward.5} parent=11 // pred_region
        _
      $region16: #{forward.5} parent=11 // pred_fallthru
        _
      // Predicated region
      $region17: #{forward.5} parent=11 // pred_check
        %p148 = pneg %p78
      $region18: #{forward.5} parent=11 // pred_check_branch
        %150 = sbr.rel (%p148) target = $region20
      $region19: #{forward.5} parent=11 // pred_region
        _
      $region20: #{forward.5} parent=11 // pred_fallthru
        _
    $region12: #{forward.5} parent=5 // pred_fallthru
      _
    %p151 = scmp.lt.s32.totalorder %s10, 2
    // Predicated region
    $region21: #{forward.5} parent=5 // pred_check
      %p152 = pneg %p151
    $region22: #{forward.5} parent=5 // pred_check_branch
      %154 = sbr.rel (%p152) target = $region24
    $region23: #{forward.5} parent=5 // pred_region
      // Predicated region
      $region25: #{forward.5} parent=23 // pred_check
        %p155 = pneg %p30
      $region26: #{forward.5} parent=23 // pred_check_branch
        %157 = sbr.rel (%p155) target = $region28
      $region27: #{forward.5} parent=23 // pred_region
        %s158 = smul.u32 32, %s10
        %p159 = scmp.lt.s32.totalorder %s158, 63
        %s160 = scalar_select %p159, %s158, 63
        %s161 = smul.addr %s160, 2
        %s162 = smul.addr %s161, 4
        %s163 = scalar_lea.vmem %s0, %s162
        %s164 = smul.u32 32, %s10
      $region28: #{forward.5} parent=23 // pred_fallthru
        _
      // Predicated region
      $region29: #{forward.5} parent=23 // pred_check
        %p165 = pneg %p98
      $region30: #{forward.5} parent=23 // pred_check_branch
        %167 = sbr.rel (%p165) target = $region32
      $region31: #{forward.5} parent=23 // pred_region
        %s168 = smul.u32 32, %s10
        %p169 = scmp.lt.s32.totalorder %s168, 63
        %s170 = scalar_select %p169, %s168, 63
        %s171 = smul.addr %s170, 4
        %s172 = scalar_lea.vmem %s3, %s171
        %s173 = smul.u32 32, %s10
      $region32: #{forward.5} parent=23 // pred_fallthru
        _
    $region24: #{forward.5} parent=5 // pred_fallthru
      _
    %p174 = scmp.le.s32.totalorder 1, %s10
    %p175 = scmp.lt.s32.totalorder %s10, 3
    %p176 = pnand %p174, %p175
    %p177 = pneg %p176
    // Predicated region
    $region33: #{forward.5} parent=5 // pred_check
      _
    $region34: #{forward.5} parent=5 // pred_check_branch
      %179 = sbr.rel (%p176) target = $region36
    $region35: #{forward.5} parent=5 // pred_region
      %s180 = ssub.s32 %s10, 1
      %s181 = smul.u32 32, %s15
      %p182 = scmp.lt.s32.totalorder %s181, 63
      %s183 = scalar_select %p182, %s181, 63
      %s184 = smul.addr %s183, 2
      %s185 = smul.addr %s184, 4
      %s186 = scalar_lea.vmem %s0, %s185
      %p187 = pneg %p36
      %p188 = pneg %p33
      %p189 = pneg %p57
      %p190 = pneg %p54
      %p191 = pneg %p78
      %p192 = pneg %p75
      %s193 = smul.u32 32, %s15
      %p194 = scmp.lt.s32.totalorder %s193, 63
      %s195 = scalar_select %p194, %s193, 63
      %s196 = smul.addr %s195, 4
      %s197 = scalar_lea.vmem %s3, %s196
      %p198 = pneg %p104
      %p199 = pneg %p101
      %p200 = pneg %p130
      %p201 = pneg %p127
      %s202 = smul.u32 32, %s15
      %p203 = scmp.lt.s32.totalorder %s202, 63
      %s204 = scalar_select %p203, %s202, 63
      %s205 = smul.addr %s204, 8
      %s206 = scalar_lea.vmem %s4, %s205
      %s207 = smul.u32 32, %s15
      %p208 = scmp.lt.s32.totalorder %s207, 63
      %s209 = scalar_select %p208, %s207, 63
      %s210 = smul.addr %s209, 2
      %s211 = smul.addr %s210, 4
      %s212 = scalar_lea.vmem %s0, %s211
      %s213 = smul.u32 32, %s15
      %s214 = smul.u32 32, %s15
      %p215 = scmp.lt.s32.totalorder %s214, 63
      %s216 = scalar_select %p215, %s214, 63
      %s217 = smul.addr %s216, 4
      %s218 = scalar_lea.vmem %s3, %s217
      %s219 = smul.u32 32, %s15
      %s220 = smul.u32 32, %s15
      %p221 = scmp.lt.s32.totalorder %s220, 63
      %s222 = scalar_select %p221, %s220, 63
      %s223 = smul.addr %s222, 8
      %s224 = scalar_lea.vmem %s4, %s223
      %s225 = smul.u32 32, %s15
      %v227 = vld [vmem:[%s212] sm:$0xff]
      %v228 = vld [vmem:[%s212 + $0x8] sm:$0xff]
      %v229 = vld [vmem:[%s212 + $0x10] sm:$0xff]
      %v230 = vld [vmem:[%s212 + $0x18] sm:$0xff]
      %v231 = vld [vmem:[%s212 + $0x20] sm:$0xff]
      %v232 = vld [vmem:[%s212 + $0x28] sm:$0xff]
      %v233 = vld [vmem:[%s212 + $0x30] sm:$0xff]
      %v234 = vld [vmem:[%s212 + $0x38] sm:$0xff]
      %v235 = vld [vmem:[%s212 + $0x40] sm:$0xff]
      %v236 = vld [vmem:[%s212 + $0x48] sm:$0xff]
      %v237 = vld [vmem:[%s212 + $0x50] sm:$0xff]
      %v238 = vld [vmem:[%s212 + $0x58] sm:$0xff]
      %v239 = vld [vmem:[%s212 + $0x60] sm:$0xff]
      %v240 = vld [vmem:[%s212 + $0x68] sm:$0xff]
      %v241 = vld [vmem:[%s212 + $0x70] sm:$0xff]
      %v242 = vld [vmem:[%s212 + $0x78] sm:$0xff]
      %v243 = vld [vmem:[%s212 + $0x80] sm:$0xff]
      %v244 = vld [vmem:[%s212 + $0x88] sm:$0xff]
      %v245 = vld [vmem:[%s212 + $0x90] sm:$0xff]
      %v246 = vld [vmem:[%s212 + $0x98] sm:$0xff]
      %v247 = vld [vmem:[%s212 + $0xa0] sm:$0xff]
      %v248 = vld [vmem:[%s212 + $0xa8] sm:$0xff]
      %v249 = vld [vmem:[%s212 + $0xb0] sm:$0xff]
      %v250 = vld [vmem:[%s212 + $0xb8] sm:$0xff]
      %v251 = vld [vmem:[%s212 + $0xc0] sm:$0xff]
      %v252 = vld [vmem:[%s212 + $0xc8] sm:$0xff]
      %v253 = vld [vmem:[%s212 + $0xd0] sm:$0xff]
      %v254 = vld [vmem:[%s212 + $0xd8] sm:$0xff]
      %v255 = vld [vmem:[%s212 + $0xe0] sm:$0xff]
      %v256 = vld [vmem:[%s212 + $0xe8] sm:$0xff]
      %v257 = vld [vmem:[%s212 + $0xf0] sm:$0xff]
      %v258 = vld [vmem:[%s212 + $0xf8] sm:$0xff]
      %v259 = vld [vmem:[%s1] sm:$0xf]
      %v260 = vld [vmem:[%s1 + $0x4] sm:$0xf]
      %v261 = vld [vmem:[%s1 + $0x8] sm:$0xf]
      %v262 = vld [vmem:[%s1 + $0xc] sm:$0xf]
      %v263 = vld [vmem:[%s1 + $0x10] sm:$0xf]
      %v264 = vld [vmem:[%s1 + $0x14] sm:$0xf]
      %v265 = vld [vmem:[%s1 + $0x18] sm:$0xf]
      %v266 = vld [vmem:[%s1 + $0x1c] sm:$0xf]
      %v267 = vld [vmem:[%s1 + $0x20] sm:$0xf]
      %v268 = vld [vmem:[%s1 + $0x24] sm:$0xf]
      %v269 = vld [vmem:[%s1 + $0x28] sm:$0xf]
      %v270 = vld [vmem:[%s1 + $0x2c] sm:$0xf]
      %v271 = vld [vmem:[%s1 + $0x30] sm:$0xf]
      %v272 = vld [vmem:[%s1 + $0x34] sm:$0xf]
      %v273 = vld [vmem:[%s1 + $0x38] sm:$0xf]
      %v274 = vld [vmem:[%s1 + $0x3c] sm:$0xf]
      %v275 = vld [vmem:[%s1 + $0x40] sm:$0xf]
      %v276 = vld [vmem:[%s1 + $0x44] sm:$0xf]
      %v277 = vld [vmem:[%s2] sm:$0x1]
      %v279 = vlaneseq
      %v280 = vshrl.u32 %v279, 7
      %v281 = vsub.s32 0, %v280
      %v282 = vrot.slane %v277, %v281
      %v316 = vunpack.c.l.b16 %v227
      %v317 = vunpack.c.h.b16 %v227
      %v318 = vunpack.c.l.b16 %v228
      %v319 = vunpack.c.h.b16 %v228
      %v320 = vunpack.c.l.b16 %v229
      %v321 = vunpack.c.h.b16 %v229
      %v322 = vunpack.c.l.b16 %v230
      %v323 = vunpack.c.h.b16 %v230
      %v324 = vunpack.c.l.b16 %v231
      %v325 = vunpack.c.h.b16 %v231
      %v326 = vunpack.c.l.b16 %v232
      %v327 = vunpack.c.h.b16 %v232
      %v328 = vunpack.c.l.b16 %v233
      %v329 = vunpack.c.h.b16 %v233
      %v330 = vunpack.c.l.b16 %v234
      %v331 = vunpack.c.h.b16 %v234
      %v332 = vunpack.c.l.b16 %v235
      %v333 = vunpack.c.h.b16 %v235
      %v334 = vunpack.c.l.b16 %v236
      %v335 = vunpack.c.h.b16 %v236
      %v336 = vunpack.c.l.b16 %v237
      %v337 = vunpack.c.h.b16 %v237
      %v338 = vunpack.c.l.b16 %v238
      %v339 = vunpack.c.h.b16 %v238
      %v340 = vunpack.c.l.b16 %v239
      %v341 = vunpack.c.h.b16 %v239
      %v342 = vunpack.c.l.b16 %v240
      %v343 = vunpack.c.h.b16 %v240
      %v344 = vunpack.c.l.b16 %v241
      %v345 = vunpack.c.h.b16 %v241
      %v346 = vunpack.c.l.b16 %v242
      %v347 = vunpack.c.h.b16 %v242
      %v348 = vunpack.c.l.b16 %v243
      %v349 = vunpack.c.h.b16 %v243
      %v350 = vunpack.c.l.b16 %v244
      %v351 = vunpack.c.h.b16 %v244
      %v352 = vunpack.c.l.b16 %v245
      %v353 = vunpack.c.h.b16 %v245
      %v354 = vunpack.c.l.b16 %v246
      %v355 = vunpack.c.h.b16 %v246
      %v356 = vunpack.c.l.b16 %v247
      %v357 = vunpack.c.h.b16 %v247
      %v358 = vunpack.c.l.b16 %v248
      %v359 = vunpack.c.h.b16 %v248
      %v360 = vunpack.c.l.b16 %v249
      %v361 = vunpack.c.h.b16 %v249
      %v362 = vunpack.c.l.b16 %v250
      %v363 = vunpack.c.h.b16 %v250
      %v364 = vunpack.c.l.b16 %v251
      %v365 = vunpack.c.h.b16 %v251
      %v366 = vunpack.c.l.b16 %v252
      %v367 = vunpack.c.h.b16 %v252
      %v368 = vunpack.c.l.b16 %v253
      %v369 = vunpack.c.h.b16 %v253
      %v370 = vunpack.c.l.b16 %v254
      %v371 = vunpack.c.h.b16 %v254
      %v372 = vunpack.c.l.b16 %v255
      %v373 = vunpack.c.h.b16 %v255
      %v374 = vunpack.c.l.b16 %v256
      %v375 = vunpack.c.h.b16 %v256
      %v376 = vunpack.c.l.b16 %v257
      %v377 = vunpack.c.h.b16 %v257
      %v378 = vunpack.c.l.b16 %v258
      %v379 = vunpack.c.h.b16 %v258
      %v380 = vpack.c.b16 %v318, %v316
      %v381 = vpack.c.b16 %v319, %v317
      %v382 = vpack.c.b16 %v322, %v320
      %v383 = vpack.c.b16 %v323, %v321
      %v384 = vpack.c.b16 %v326, %v324
      %v385 = vpack.c.b16 %v327, %v325
      %v386 = vpack.c.b16 %v330, %v328
      %v387 = vpack.c.b16 %v331, %v329
      %v388 = vpack.c.b16 %v334, %v332
      %v389 = vpack.c.b16 %v335, %v333
      %v390 = vpack.c.b16 %v338, %v336
      %v391 = vpack.c.b16 %v339, %v337
      %v392 = vpack.c.b16 %v342, %v340
      %v393 = vpack.c.b16 %v343, %v341
      %v394 = vpack.c.b16 %v346, %v344
      %v395 = vpack.c.b16 %v347, %v345
      %v396 = vpack.c.b16 %v350, %v348
      %v397 = vpack.c.b16 %v351, %v349
      %v398 = vpack.c.b16 %v354, %v352
      %v399 = vpack.c.b16 %v355, %v353
      %v400 = vpack.c.b16 %v358, %v356
      %v401 = vpack.c.b16 %v359, %v357
      %v402 = vpack.c.b16 %v362, %v360
      %v403 = vpack.c.b16 %v363, %v361
      %v404 = vpack.c.b16 %v366, %v364
      %v405 = vpack.c.b16 %v367, %v365
      %v406 = vpack.c.b16 %v370, %v368
      %v407 = vpack.c.b16 %v371, %v369
      %v408 = vpack.c.b16 %v374, %v372
      %v409 = vpack.c.b16 %v375, %v373
      %v410 = vpack.c.b16 %v378, %v376
      %v411 = vpack.c.b16 %v379, %v377
      %v446 = vunpack.c.l.b16 %v259
      %v447 = vunpack.c.l.b16 %v260
      %v448 = vunpack.c.l.b16 %v261
      %v449 = vunpack.c.l.b16 %v262
      %v450 = vunpack.c.l.b16 %v263
      %v451 = vunpack.c.l.b16 %v264
      %v452 = vunpack.c.l.b16 %v265
      %v453 = vunpack.c.l.b16 %v266
      %v454 = vunpack.c.l.b16 %v267
      %v455 = vunpack.c.l.b16 %v268
      %v456 = vunpack.c.l.b16 %v269
      %v457 = vunpack.c.l.b16 %v270
      %v458 = vunpack.c.l.b16 %v271
      %v459 = vunpack.c.l.b16 %v272
      %v460 = vunpack.c.l.b16 %v273
      %v461 = vunpack.c.l.b16 %v274
      %v462 = vunpack.c.l.b16 %v275
      %v463 = vunpack.c.l.b16 %v276
      %v464 = vpack.c.b16 %v447, %v446
      %v465 = vpack.c.b16 %v449, %v448
      %v466 = vpack.c.b16 %v451, %v450
      %v467 = vpack.c.b16 %v453, %v452
      %v468 = vpack.c.b16 %v455, %v454
      %v469 = vpack.c.b16 %v457, %v456
      %v470 = vpack.c.b16 %v459, %v458
      %v471 = vpack.c.b16 %v461, %v460
      %v472 = vpack.c.b16 %v463, %v462
      %vm482 = vcmask 130048
      %v484 = vsel %vm482, %v381, 0
      %v487 = vsel %vm482, %v383, 0
      %v490 = vsel %vm482, %v385, 0
      %v493 = vsel %vm482, %v387, 0
      %v496 = vsel %vm482, %v389, 0
      %v499 = vsel %vm482, %v391, 0
      %v502 = vsel %vm482, %v393, 0
      %v505 = vsel %vm482, %v395, 0
      %v508 = vsel %vm482, %v397, 0
      %v511 = vsel %vm482, %v399, 0
      %v514 = vsel %vm482, %v401, 0
      %v517 = vsel %vm482, %v403, 0
      %v520 = vsel %vm482, %v405, 0
      %v523 = vsel %vm482, %v407, 0
      %v526 = vsel %vm482, %v409, 0
      %v529 = vsel %vm482, %v411, 0
      %531 = vmatprep.subr.bf16.mxu0 0
      %532 = vmatpush1.bf16.msra.mxu0 %v464
      %533 = vmatprep.subr.bf16.mxu0 0
      %534 = vmatpush1.bf16.msra.mxu0 %v465
      %535 = vmatprep.subr.bf16.mxu0 0
      %536 = vmatpush1.bf16.msra.mxu0 %v466
      %537 = vmatprep.subr.bf16.mxu0 0
      %538 = vmatpush1.bf16.msra.mxu0 %v467
      %539 = vmatprep.subr.bf16.mxu0 0
      %540 = vmatpush1.bf16.msra.mxu0 %v468
      %541 = vmatprep.subr.bf16.mxu0 0
      %542 = vmatpush1.bf16.msra.mxu0 %v469
      %543 = vmatprep.subr.bf16.mxu0 0
      %544 = vmatpush1.bf16.msra.mxu0 %v470
      %545 = vmatprep.subr.bf16.mxu0 0
      %546 = vmatpush1.bf16.msra.mxu0 %v471
      %547 = vmatprep.subr.bf16.mxu0 0
      %548 = vmatpush1.bf16.msra.mxu0 %v472
      %549 = vmatprep.subr.bf16.mxu0 0
      %550 = vmatpush1.bf16.msra.mxu0 0
      %551 = vmatprep.subr.bf16.mxu0 0
      %552 = vmatpush1.bf16.msra.mxu0 0
      %553 = vmatprep.subr.bf16.mxu0 0
      %554 = vmatpush1.bf16.msra.mxu0 0
      %555 = vmatprep.subr.bf16.mxu0 0
      %556 = vmatpush1.bf16.msra.mxu0 0
      %557 = vmatprep.subr.bf16.mxu0 0
      %558 = vmatpush1.bf16.msra.mxu0 0
      %559 = vmatprep.subr.bf16.mxu0 0
      %560 = vmatpush1.bf16.msra.mxu0 0
      %561 = vmatprep.subr.bf16.mxu0 0
      %562 = vmatpush1.bf16.msra.mxu0 0
      %563 = vmatprep.mubr.bf16.mxu0 %v484
      %564 = vmatmul.mubr.bf16.gmra.mrb[0].mxu0 %v380
      %v565 = vpop.f32.mrb[0].mxu0
      %v566 = vadd.f32 %v282, %v565
      %v567 = vpop.f32.mrb[0].mxu0
      %v568 = vpop.f32.mrb[0].mxu0
      %v569 = vadd.f32 %v282, %v568
      %v570 = vpop.f32.mrb[0].mxu0
      %571 = vmatprep.mubr.bf16.mxu0 %v487
      %572 = vmatmul.mubr.bf16.gmra.mrb[0].mxu0 %v382
      %v573 = vpop.f32.mrb[0].mxu0
      %v574 = vadd.f32 %v282, %v573
      %v575 = vpop.f32.mrb[0].mxu0
      %v576 = vpop.f32.mrb[0].mxu0
      %v577 = vadd.f32 %v282, %v576
      %v578 = vpop.f32.mrb[0].mxu0
      %579 = vmatprep.mubr.bf16.mxu0 %v490
      %580 = vmatmul.mubr.bf16.gmra.mrb[0].mxu0 %v384
      %v581 = vpop.f32.mrb[0].mxu0
      %v582 = vadd.f32 %v282, %v581
      %v583 = vpop.f32.mrb[0].mxu0
      %v584 = vpop.f32.mrb[0].mxu0
      %v585 = vadd.f32 %v282, %v584
      %v586 = vpop.f32.mrb[0].mxu0
      %587 = vmatprep.mubr.bf16.mxu0 %v493
      %588 = vmatmul.mubr.bf16.gmra.mrb[0].mxu0 %v386
      %v589 = vpop.f32.mrb[0].mxu0
      %v590 = vadd.f32 %v282, %v589
      %v591 = vpop.f32.mrb[0].mxu0
      %v592 = vpop.f32.mrb[0].mxu0
      %v593 = vadd.f32 %v282, %v592
      %v594 = vpop.f32.mrb[0].mxu0
      %595 = vmatprep.mubr.bf16.mxu0 %v496
      %596 = vmatmul.mubr.bf16.gmra.mrb[0].mxu0 %v388
      %v597 = vpop.f32.mrb[0].mxu0
      %v598 = vadd.f32 %v282, %v597
      %v599 = vpop.f32.mrb[0].mxu0
      %v600 = vpop.f32.mrb[0].mxu0
      %v601 = vadd.f32 %v282, %v600
      %v602 = vpop.f32.mrb[0].mxu0
      %603 = vmatprep.mubr.bf16.mxu0 %v499
      %604 = vmatmul.mubr.bf16.gmra.mrb[0].mxu0 %v390
      %v605 = vpop.f32.mrb[0].mxu0
      %v606 = vadd.f32 %v282, %v605
      %v607 = vpop.f32.mrb[0].mxu0
      %v608 = vpop.f32.mrb[0].mxu0
      %v609 = vadd.f32 %v282, %v608
      %v610 = vpop.f32.mrb[0].mxu0
      %611 = vmatprep.mubr.bf16.mxu0 %v502
      %612 = vmatmul.mubr.bf16.gmra.mrb[0].mxu0 %v392
      %v613 = vpop.f32.mrb[0].mxu0
      %v614 = vadd.f32 %v282, %v613
      %v615 = vpop.f32.mrb[0].mxu0
      %v616 = vpop.f32.mrb[0].mxu0
      %v617 = vadd.f32 %v282, %v616
      %v618 = vpop.f32.mrb[0].mxu0
      %619 = vmatprep.mubr.bf16.mxu0 %v505
      %620 = vmatmul.mubr.bf16.gmra.mrb[0].mxu0 %v394
      %v621 = vpop.f32.mrb[0].mxu0
      %v622 = vadd.f32 %v282, %v621
      %v623 = vpop.f32.mrb[0].mxu0
      %v624 = vpop.f32.mrb[0].mxu0
      %v625 = vadd.f32 %v282, %v624
      %v626 = vpop.f32.mrb[0].mxu0
      %627 = vmatprep.mubr.bf16.mxu0 %v508
      %628 = vmatmul.mubr.bf16.gmra.mrb[0].mxu0 %v396
      %v629 = vpop.f32.mrb[0].mxu0
      %v630 = vadd.f32 %v282, %v629
      %v631 = vpop.f32.mrb[0].mxu0
      %v632 = vpop.f32.mrb[0].mxu0
      %v633 = vadd.f32 %v282, %v632
      %v634 = vpop.f32.mrb[0].mxu0
      %635 = vmatprep.mubr.bf16.mxu0 %v511
      %636 = vmatmul.mubr.bf16.gmra.mrb[0].mxu0 %v398
      %v637 = vpop.f32.mrb[0].mxu0
      %v638 = vadd.f32 %v282, %v637
      %v639 = vpop.f32.mrb[0].mxu0
      %v640 = vpop.f32.mrb[0].mxu0
      %v641 = vadd.f32 %v282, %v640
      %v642 = vpop.f32.mrb[0].mxu0
      %643 = vmatprep.mubr.bf16.mxu0 %v514
      %644 = vmatmul.mubr.bf16.gmra.mrb[0].mxu0 %v400
      %v645 = vpop.f32.mrb[0].mxu0
      %v646 = vadd.f32 %v282, %v645
      %v647 = vpop.f32.mrb[0].mxu0
      %v648 = vpop.f32.mrb[0].mxu0
      %v649 = vadd.f32 %v282, %v648
      %v650 = vpop.f32.mrb[0].mxu0
      %651 = vmatprep.mubr.bf16.mxu0 %v517
      %652 = vmatmul.mubr.bf16.gmra.mrb[0].mxu0 %v402
      %v653 = vpop.f32.mrb[0].mxu0
      %v654 = vadd.f32 %v282, %v653
      %v655 = vpop.f32.mrb[0].mxu0
      %v656 = vpop.f32.mrb[0].mxu0
      %v657 = vadd.f32 %v282, %v656
      %v658 = vpop.f32.mrb[0].mxu0
      %659 = vmatprep.mubr.bf16.mxu0 %v520
      %660 = vmatmul.mubr.bf16.gmra.mrb[0].mxu0 %v404
      %v661 = vpop.f32.mrb[0].mxu0
      %v662 = vadd.f32 %v282, %v661
      %v663 = vpop.f32.mrb[0].mxu0
      %v664 = vpop.f32.mrb[0].mxu0
      %v665 = vadd.f32 %v282, %v664
      %v666 = vpop.f32.mrb[0].mxu0
      %667 = vmatprep.mubr.bf16.mxu0 %v523
      %668 = vmatmul.mubr.bf16.gmra.mrb[0].mxu0 %v406
      %v669 = vpop.f32.mrb[0].mxu0
      %v670 = vadd.f32 %v282, %v669
      %v671 = vpop.f32.mrb[0].mxu0
      %v672 = vpop.f32.mrb[0].mxu0
      %v673 = vadd.f32 %v282, %v672
      %v674 = vpop.f32.mrb[0].mxu0
      %675 = vmatprep.mubr.bf16.mxu0 %v526
      %676 = vmatmul.mubr.bf16.gmra.mrb[0].mxu0 %v408
      %v677 = vpop.f32.mrb[0].mxu0
      %v678 = vadd.f32 %v282, %v677
      %v679 = vpop.f32.mrb[0].mxu0
      %v680 = vpop.f32.mrb[0].mxu0
      %v681 = vadd.f32 %v282, %v680
      %v682 = vpop.f32.mrb[0].mxu0
      %683 = vmatprep.mubr.bf16.mxu0 %v529
      %684 = vmatmul.mubr.bf16.gmra.mrb[0].mxu0 %v410
      %v685 = vpop.f32.mrb[0].mxu0
      %v686 = vadd.f32 %v282, %v685
      %v687 = vpop.f32.mrb[0].mxu0
      %v688 = vpop.f32.mrb[0].mxu0
      %v689 = vadd.f32 %v282, %v688
      %v690 = vpop.f32.mrb[0].mxu0
      %691 = vdwg.mxu0
      %v692 = vld [vmem:[%s218] sm:$0xf]
      %v693 = vld [vmem:[%s218 + $0x4] sm:$0xf]
      %v694 = vld [vmem:[%s218 + $0x8] sm:$0xf]
      %v695 = vld [vmem:[%s218 + $0xc] sm:$0xf]
      %v696 = vld [vmem:[%s218 + $0x10] sm:$0xf]
      %v697 = vld [vmem:[%s218 + $0x14] sm:$0xf]
      %v698 = vld [vmem:[%s218 + $0x18] sm:$0xf]
      %v699 = vld [vmem:[%s218 + $0x1c] sm:$0xf]
      %v700 = vld [vmem:[%s218 + $0x20] sm:$0xf]
      %v701 = vld [vmem:[%s218 + $0x24] sm:$0xf]
      %v702 = vld [vmem:[%s218 + $0x28] sm:$0xf]
      %v703 = vld [vmem:[%s218 + $0x2c] sm:$0xf]
      %v704 = vld [vmem:[%s218 + $0x30] sm:$0xf]
      %v705 = vld [vmem:[%s218 + $0x34] sm:$0xf]
      %v706 = vld [vmem:[%s218 + $0x38] sm:$0xf]
      %v707 = vld [vmem:[%s218 + $0x3c] sm:$0xf]
      %v708 = vld [vmem:[%s218 + $0x40] sm:$0xf]
      %v709 = vld [vmem:[%s218 + $0x44] sm:$0xf]
      %v710 = vld [vmem:[%s218 + $0x48] sm:$0xf]
      %v711 = vld [vmem:[%s218 + $0x4c] sm:$0xf]
      %v712 = vld [vmem:[%s218 + $0x50] sm:$0xf]
      %v713 = vld [vmem:[%s218 + $0x54] sm:$0xf]
      %v714 = vld [vmem:[%s218 + $0x58] sm:$0xf]
      %v715 = vld [vmem:[%s218 + $0x5c] sm:$0xf]
      %v716 = vld [vmem:[%s218 + $0x60] sm:$0xf]
      %v717 = vld [vmem:[%s218 + $0x64] sm:$0xf]
      %v718 = vld [vmem:[%s218 + $0x68] sm:$0xf]
      %v719 = vld [vmem:[%s218 + $0x6c] sm:$0xf]
      %v720 = vld [vmem:[%s218 + $0x70] sm:$0xf]
      %v721 = vld [vmem:[%s218 + $0x74] sm:$0xf]
      %v722 = vld [vmem:[%s218 + $0x78] sm:$0xf]
      %v723 = vld [vmem:[%s218 + $0x7c] sm:$0xf]
      %v724 = vunpack.c.l.bf16 %v692
      %v725 = vunpack.c.l.bf16 %v693
      %v726 = vunpack.c.l.bf16 %v694
      %v727 = vunpack.c.l.bf16 %v695
      %v728 = vunpack.c.l.bf16 %v696
      %v729 = vunpack.c.l.bf16 %v697
      %v730 = vunpack.c.l.bf16 %v698
      %v731 = vunpack.c.l.bf16 %v699
      %v732 = vunpack.c.l.bf16 %v700
      %v733 = vunpack.c.l.bf16 %v701
      %v734 = vunpack.c.l.bf16 %v702
      %v735 = vunpack.c.l.bf16 %v703
      %v736 = vunpack.c.l.bf16 %v704
      %v737 = vunpack.c.l.bf16 %v705
      %v738 = vunpack.c.l.bf16 %v706
      %v739 = vunpack.c.l.bf16 %v707
      %v740 = vunpack.c.l.bf16 %v708
      %v741 = vunpack.c.l.bf16 %v709
      %v742 = vunpack.c.l.bf16 %v710
      %v743 = vunpack.c.l.bf16 %v711
      %v744 = vunpack.c.l.bf16 %v712
      %v745 = vunpack.c.l.bf16 %v713
      %v746 = vunpack.c.l.bf16 %v714
      %v747 = vunpack.c.l.bf16 %v715
      %v748 = vunpack.c.l.bf16 %v716
      %v749 = vunpack.c.l.bf16 %v717
      %v750 = vunpack.c.l.bf16 %v718
      %v751 = vunpack.c.l.bf16 %v719
      %v752 = vunpack.c.l.bf16 %v720
      %v753 = vunpack.c.l.bf16 %v721
      %v754 = vunpack.c.l.bf16 %v722
      %v755 = vunpack.c.l.bf16 %v723
      %v756 = vadd.f32 %v566, %v724
      %v757 = vadd.f32 %v569, %v725
      %v758 = vadd.f32 %v574, %v726
      %v759 = vadd.f32 %v577, %v727
      %v760 = vadd.f32 %v582, %v728
      %v761 = vadd.f32 %v585, %v729
      %v762 = vadd.f32 %v590, %v730
      %v763 = vadd.f32 %v593, %v731
      %v764 = vadd.f32 %v598, %v732
      %v765 = vadd.f32 %v601, %v733
      %v766 = vadd.f32 %v606, %v734
      %v767 = vadd.f32 %v609, %v735
      %v768 = vadd.f32 %v614, %v736
      %v769 = vadd.f32 %v617, %v737
      %v770 = vadd.f32 %v622, %v738
      %v771 = vadd.f32 %v625, %v739
      %v772 = vadd.f32 %v630, %v740
      %v773 = vadd.f32 %v633, %v741
      %v774 = vadd.f32 %v638, %v742
      %v775 = vadd.f32 %v641, %v743
      %v776 = vadd.f32 %v646, %v744
      %v777 = vadd.f32 %v649, %v745
      %v778 = vadd.f32 %v654, %v746
      %v779 = vadd.f32 %v657, %v747
      %v780 = vadd.f32 %v662, %v748
      %v781 = vadd.f32 %v665, %v749
      %v782 = vadd.f32 %v670, %v750
      %v783 = vadd.f32 %v673, %v751
      %v784 = vadd.f32 %v678, %v752
      %v785 = vadd.f32 %v681, %v753
      %v786 = vadd.f32 %v686, %v754
      %v787 = vadd.f32 %v689, %v755
      %v788 = vmax.f32 %v756, 0.0
      %v789 = vmax.f32 %v757, 0.0
      %v790 = vmax.f32 %v758, 0.0
      %v791 = vmax.f32 %v759, 0.0
      %v792 = vmax.f32 %v760, 0.0
      %v793 = vmax.f32 %v761, 0.0
      %v794 = vmax.f32 %v762, 0.0
      %v795 = vmax.f32 %v763, 0.0
      %v796 = vmax.f32 %v764, 0.0
      %v797 = vmax.f32 %v765, 0.0
      %v798 = vmax.f32 %v766, 0.0
      %v799 = vmax.f32 %v767, 0.0
      %v800 = vmax.f32 %v768, 0.0
      %v801 = vmax.f32 %v769, 0.0
      %v802 = vmax.f32 %v770, 0.0
      %v803 = vmax.f32 %v771, 0.0
      %v804 = vmax.f32 %v772, 0.0
      %v805 = vmax.f32 %v773, 0.0
      %v806 = vmax.f32 %v774, 0.0
      %v807 = vmax.f32 %v775, 0.0
      %v808 = vmax.f32 %v776, 0.0
      %v809 = vmax.f32 %v777, 0.0
      %v810 = vmax.f32 %v778, 0.0
      %v811 = vmax.f32 %v779, 0.0
      %v812 = vmax.f32 %v780, 0.0
      %v813 = vmax.f32 %v781, 0.0
      %v814 = vmax.f32 %v782, 0.0
      %v815 = vmax.f32 %v783, 0.0
      %v816 = vmax.f32 %v784, 0.0
      %v817 = vmax.f32 %v785, 0.0
      %v818 = vmax.f32 %v786, 0.0
      %v819 = vmax.f32 %v787, 0.0
      %820 = vst [vmem:[%s224] sm:$0xff] %v788
      %821 = vst [vmem:[%s224 + $0x8] sm:$0xff] %v789
      %822 = vst [vmem:[%s224 + $0x10] sm:$0xff] %v790
      %823 = vst [vmem:[%s224 + $0x18] sm:$0xff] %v791
      %824 = vst [vmem:[%s224 + $0x20] sm:$0xff] %v792
      %825 = vst [vmem:[%s224 + $0x28] sm:$0xff] %v793
      %826 = vst [vmem:[%s224 + $0x30] sm:$0xff] %v794
      %827 = vst [vmem:[%s224 + $0x38] sm:$0xff] %v795
      %828 = vst [vmem:[%s224 + $0x40] sm:$0xff] %v796
      %829 = vst [vmem:[%s224 + $0x48] sm:$0xff] %v797
      %830 = vst [vmem:[%s224 + $0x50] sm:$0xff] %v798
      %831 = vst [vmem:[%s224 + $0x58] sm:$0xff] %v799
      %832 = vst [vmem:[%s224 + $0x60] sm:$0xff] %v800
      %833 = vst [vmem:[%s224 + $0x68] sm:$0xff] %v801
      %834 = vst [vmem:[%s224 + $0x70] sm:$0xff] %v802
      %835 = vst [vmem:[%s224 + $0x78] sm:$0xff] %v803
      %836 = vst [vmem:[%s224 + $0x80] sm:$0xff] %v804
      %837 = vst [vmem:[%s224 + $0x88] sm:$0xff] %v805
      %838 = vst [vmem:[%s224 + $0x90] sm:$0xff] %v806
      %839 = vst [vmem:[%s224 + $0x98] sm:$0xff] %v807
      %840 = vst [vmem:[%s224 + $0xa0] sm:$0xff] %v808
      %841 = vst [vmem:[%s224 + $0xa8] sm:$0xff] %v809
      %842 = vst [vmem:[%s224 + $0xb0] sm:$0xff] %v810
      %843 = vst [vmem:[%s224 + $0xb8] sm:$0xff] %v811
      %844 = vst [vmem:[%s224 + $0xc0] sm:$0xff] %v812
      %845 = vst [vmem:[%s224 + $0xc8] sm:$0xff] %v813
      %846 = vst [vmem:[%s224 + $0xd0] sm:$0xff] %v814
      %847 = vst [vmem:[%s224 + $0xd8] sm:$0xff] %v815
      %848 = vst [vmem:[%s224 + $0xe0] sm:$0xff] %v816
      %849 = vst [vmem:[%s224 + $0xe8] sm:$0xff] %v817
      %850 = vst [vmem:[%s224 + $0xf0] sm:$0xff] %v818
      %851 = vst [vmem:[%s224 + $0xf8] sm:$0xff] %v819
      %s852 = smul.u32 32, %s15
      %p853 = scmp.lt.s32.totalorder %s852, 63
      %s854 = scalar_select %p853, %s852, 63
      %s855 = smul.addr %s854, 8
      %s856 = scalar_lea.vmem %s4, %s855
      // Predicated region
      $region37: #{forward.5} parent=35 // pred_check
        %p857 = pneg %p127
      $region38: #{forward.5} parent=35 // pred_check_branch
        %859 = sbr.rel (%p857) target = $region40
      $region39: #{forward.5} parent=35 // pred_region
        %s860 = smul.u32 32, %s15
      $region40: #{forward.5} parent=35 // pred_fallthru
        _
    $region36: #{forward.5} parent=5 // pred_fallthru
      _
    %p861 = scmp.le.s32.totalorder 2, %s10
    // Predicated region
    $region41: #{forward.5} parent=5 // pred_check
      %p862 = pneg %p861
    $region42: #{forward.5} parent=5 // pred_check_branch
      %864 = sbr.rel (%p862) target = $region44
    $region43: #{forward.5} parent=5 // pred_region
      %s865 = ssub.s32 %s10, 2
      // Predicated region
      $region45: #{forward.5} parent=43 // pred_check
        %p866 = pneg %p133
      $region46: #{forward.5} parent=43 // pred_check_branch
        %868 = sbr.rel (%p866) target = $region48
      $region47: #{forward.5} parent=43 // pred_region
        %s869 = smul.u32 32, %s16
        %p870 = scmp.lt.s32.totalorder %s869, 63
        %s871 = scalar_select %p870, %s869, 63
        %s872 = smul.addr %s871, 8
        %s873 = scalar_lea.vmem %s4, %s872
      $region48: #{forward.5} parent=43 // pred_fallthru
        _
    $region44: #{forward.5} parent=5 // pred_fallthru
      _
  $region6: #{forward.5} parent=0 // loop_footer
    %s14 = sadd.s32 1, %s10
  $region7: #{forward.5} parent=0 // loop_footer_branch
    %9 = sbr.rel target = $region3
  $region8: #{forward.5} parent=0 // loop_exit
    _

// kernel: forward.4
$region0: #{forward.4}
  #allocation0 [shape = 'u32[]', space=smem, size = 0x4, offset = 0x4, fixed_abs, tag = 'smem constant byte address 0x4 - core index']
  #allocation1 [shape = 'u32[144,128]{1,0:T(1,128)}', space=vmem, size = 0x12000, scoped, tag = 'internal scratch']
  %s0 = inlined_call_operand.vmem [shape: bf16[512,144], index: 0, kind: input, shape index: {}]
  %s1 = inlined_call_operand.vmem [shape: bf16[144,128], index: 1, kind: input, shape index: {}]
  %s2 = inlined_call_operand.vmem [shape: f32[1,128], index: 2, kind: input, shape index: {}]
  %s3 = inlined_call_operand.vmem [shape: bf16[512,128], index: 3, kind: output, shape index: {}]
  %s4 = sld [smem:[#allocation0]]
  $region45: #{forward.4} parent=0
    _
  %s6 = ssub.s32 1, %s4
  %s7 = scalar_select 0, %s6, %s4
  loop: start=0, step=1, limit=4
  $region2: #{forward.4} parent=0 // loop_pre_header
    _
  $region3: #{forward.4} parent=0 // loop_header
    %s9 = sphi 0, %s13
    %p10 = scmp.ge.s32.totalorder %s9, 4
    %s19 = sphi 0, %s21
    %s22 = sphi 0, %s19
    %s23 = sphi 0, %s22
    %s39 = sphi 0, %s23
    %s43 = sphi 0, %s43
    %s45 = sphi 0, %s43
    %s46 = sphi 0, %s45
    %s60 = sphi 0, %s46
    %s64 = sphi 0, %s64
    %s66 = sphi 0, %s64
    %s67 = sphi 0, %s66
    %s81 = sphi 0, %s67
    %s87 = sphi 0, %s89
    %s90 = sphi 0, %s87
    %s91 = sphi 0, %s90
    %s107 = sphi 0, %s91
  $region4: #{forward.4} parent=0 // loop_header_branch
    %12 = sbr.rel (%p10) target = $region8
  $region5: #{forward.4} parent=0 // loop_body
    %s14 = ssub.s32 %s9, 1
    %s15 = ssub.s32 %s9, 2
    %s16 = sadd.s32 %s9, 1
    %s17 = ssub.s32 %s9, %s16
    %p18 = scmp.eq.s32.totalorder %s17, 0
    %s20 = sadd.s32 %s19, 1
    %s21 = scalar_select %p18, %s19, %s20
    %p24 = pneg %p18
    %p25 = scmp.eq.s32.totalorder %s9, 1
    %p26 = por %p24, %p25
    %p27 = scmp.ne.s32.totalorder %s19, %s22
    %p28 = scmp.eq.s32.totalorder %s9, 0
    %p29 = por %p27, %p28
    %p30 = scmp.ne.s32.totalorder %s19, %s22
    %p31 = scmp.eq.s32.totalorder %s14, 1
    %p32 = por %p30, %p31
    %p33 = scmp.ne.s32.totalorder %s22, %s23
    %p34 = scmp.eq.s32.totalorder %s14, 0
    %p35 = por %p33, %p34
    %p36 = scmp.ne.s32.totalorder %s22, %s23
    %p37 = scmp.eq.s32.totalorder %s15, 1
    %p38 = por %p36, %p37
    %p40 = scmp.ne.s32.totalorder %s23, %s39
    %p41 = scmp.eq.s32.totalorder %s15, 0
    %p42 = por %p40, %p41
    %s44 = sadd.s32 %s43, 1
    %p47 = scmp.eq.s32.totalorder %s9, 1
    %p48 = scmp.ne.s32.totalorder %s43, %s45
    %p49 = scmp.eq.s32.totalorder %s9, 0
    %p50 = por %p48, %p49
    %p51 = scmp.ne.s32.totalorder %s43, %s45
    %p52 = scmp.eq.s32.totalorder %s14, 1
    %p53 = por %p51, %p52
    %p54 = scmp.ne.s32.totalorder %s45, %s46
    %p55 = scmp.eq.s32.totalorder %s14, 0
    %p56 = por %p54, %p55
    %p57 = scmp.ne.s32.totalorder %s45, %s46
    %p58 = scmp.eq.s32.totalorder %s15, 1
    %p59 = por %p57, %p58
    %p61 = scmp.ne.s32.totalorder %s46, %s60
    %p62 = scmp.eq.s32.totalorder %s15, 0
    %p63 = por %p61, %p62
    %s65 = sadd.s32 %s64, 1
    %p68 = scmp.eq.s32.totalorder %s9, 1
    %p69 = scmp.ne.s32.totalorder %s64, %s66
    %p70 = scmp.eq.s32.totalorder %s9, 0
    %p71 = por %p69, %p70
    %p72 = scmp.ne.s32.totalorder %s64, %s66
    %p73 = scmp.eq.s32.totalorder %s14, 1
    %p74 = por %p72, %p73
    %p75 = scmp.ne.s32.totalorder %s66, %s67
    %p76 = scmp.eq.s32.totalorder %s14, 0
    %p77 = por %p75, %p76
    %p78 = scmp.ne.s32.totalorder %s66, %s67
    %p79 = scmp.eq.s32.totalorder %s15, 1
    %p80 = por %p78, %p79
    %p82 = scmp.ne.s32.totalorder %s67, %s81
    %p83 = scmp.eq.s32.totalorder %s15, 0
    %p84 = por %p82, %p83
    %s85 = ssub.s32 %s9, %s16
    %p86 = scmp.eq.s32.totalorder %s85, 0
    %s88 = sadd.s32 %s87, 1
    %s89 = scalar_select %p86, %s87, %s88
    %p92 = pneg %p86
    %p93 = scmp.eq.s32.totalorder %s9, 1
    %p94 = por %p92, %p93
    %p95 = scmp.ne.s32.totalorder %s87, %s90
    %p96 = scmp.eq.s32.totalorder %s9, 0
    %p97 = por %p95, %p96
    %p98 = scmp.ne.s32.totalorder %s87, %s90
    %p99 = scmp.eq.s32.totalorder %s14, 1
    %p100 = por %p98, %p99
    %p101 = scmp.ne.s32.totalorder %s90, %s91
    %p102 = scmp.eq.s32.totalorder %s14, 0
    %p103 = por %p101, %p102
    %p104 = scmp.ne.s32.totalorder %s90, %s91
    %p105 = scmp.eq.s32.totalorder %s15, 1
    %p106 = por %p104, %p105
    %p108 = scmp.ne.s32.totalorder %s91, %s107
    %p109 = scmp.eq.s32.totalorder %s15, 0
    %p110 = por %p108, %p109
    %p111 = scmp.le.s32.totalorder 1, %s9
    %p112 = scmp.lt.s32.totalorder %s9, 3
    %p113 = pnand %p111, %p112
    %p114 = pneg %p113
    // Predicated region
    $region9: #{forward.4} parent=5 // pred_check
      _
    $region10: #{forward.4} parent=5 // pred_check_branch
      %116 = sbr.rel (%p113) target = $region12
    $region11: #{forward.4} parent=5 // pred_region
      %s117 = ssub.s32 %s9, 1
      // Predicated region
      $region13: #{forward.4} parent=11 // pred_check
        %p118 = pneg %p56
      $region14: #{forward.4} parent=11 // pred_check_branch
        %120 = sbr.rel (%p118) target = $region16
      $region15: #{forward.4} parent=11 // pred_region
        _
      $region16: #{forward.4} parent=11 // pred_fallthru
        _
      // Predicated region
      $region17: #{forward.4} parent=11 // pred_check
        %p121 = pneg %p77
      $region18: #{forward.4} parent=11 // pred_check_branch
        %123 = sbr.rel (%p121) target = $region20
      $region19: #{forward.4} parent=11 // pred_region
        _
      $region20: #{forward.4} parent=11 // pred_fallthru
        _
    $region12: #{forward.4} parent=5 // pred_fallthru
      _
    %p124 = scmp.lt.s32.totalorder %s9, 2
    // Predicated region
    $region21: #{forward.4} parent=5 // pred_check
      %p125 = pneg %p124
    $region22: #{forward.4} parent=5 // pred_check_branch
      %127 = sbr.rel (%p125) target = $region24
    $region23: #{forward.4} parent=5 // pred_region
      // Predicated region
      $region25: #{forward.4} parent=23 // pred_check
        %p128 = pneg %p29
      $region26: #{forward.4} parent=23 // pred_check_branch
        %130 = sbr.rel (%p128) target = $region28
      $region27: #{forward.4} parent=23 // pred_region
        %s131 = smul.u32 32, %s9
        %p132 = scmp.lt.s32.totalorder %s131, 63
        %s133 = scalar_select %p132, %s131, 63
        %s134 = smul.addr %s133, 2
        %s135 = smul.addr %s134, 4
        %s136 = scalar_lea.vmem %s0, %s135
        %s137 = smul.u32 32, %s9
      $region28: #{forward.4} parent=23 // pred_fallthru
        _
    $region24: #{forward.4} parent=5 // pred_fallthru
      _
    %p138 = scmp.le.s32.totalorder 1, %s9
    %p139 = scmp.lt.s32.totalorder %s9, 3
    %p140 = pnand %p138, %p139
    %p141 = pneg %p140
    // Predicated region
    $region29: #{forward.4} parent=5 // pred_check
      _
    $region30: #{forward.4} parent=5 // pred_check_branch
      %143 = sbr.rel (%p140) target = $region32
    $region31: #{forward.4} parent=5 // pred_region
      %s144 = ssub.s32 %s9, 1
      %s145 = smul.u32 32, %s14
      %p146 = scmp.lt.s32.totalorder %s145, 63
      %s147 = scalar_select %p146, %s145, 63
      %s148 = smul.addr %s147, 2
      %s149 = smul.addr %s148, 4
      %s150 = scalar_lea.vmem %s0, %s149
      %p151 = pneg %p35
      %p152 = pneg %p32
      %p153 = pneg %p56
      %p154 = pneg %p53
      %p155 = pneg %p77
      %p156 = pneg %p74
      %p157 = pneg %p103
      %p158 = pneg %p100
      %s159 = smul.u32 32, %s14
      %p160 = scmp.lt.s32.totalorder %s159, 63
      %s161 = scalar_select %p160, %s159, 63
      %s162 = smul.addr %s161, 4
      %s163 = scalar_lea.vmem %s3, %s162
      %s164 = smul.u32 32, %s14
      %p165 = scmp.lt.s32.totalorder %s164, 63
      %s166 = scalar_select %p165, %s164, 63
      %s167 = smul.addr %s166, 2
      %s168 = smul.addr %s167, 4
      %s169 = scalar_lea.vmem %s0, %s168
      %s170 = smul.u32 32, %s14
      %s171 = smul.u32 32, %s14
      %p172 = scmp.lt.s32.totalorder %s171, 63
      %s173 = scalar_select %p172, %s171, 63
      %s174 = smul.addr %s173, 4
      %s175 = scalar_lea.vmem %s3, %s174
      %s176 = smul.u32 32, %s14
      %v178 = vld [vmem:[%s169] sm:$0xff]
      %v179 = vld [vmem:[%s169 + $0x8] sm:$0xff]
      %v180 = vld [vmem:[%s169 + $0x10] sm:$0xff]
      %v181 = vld [vmem:[%s169 + $0x18] sm:$0xff]
      %v182 = vld [vmem:[%s169 + $0x20] sm:$0xff]
      %v183 = vld [vmem:[%s169 + $0x28] sm:$0xff]
      %v184 = vld [vmem:[%s169 + $0x30] sm:$0xff]
      %v185 = vld [vmem:[%s169 + $0x38] sm:$0xff]
      %v186 = vld [vmem:[%s169 + $0x40] sm:$0xff]
      %v187 = vld [vmem:[%s169 + $0x48] sm:$0xff]
      %v188 = vld [vmem:[%s169 + $0x50] sm:$0xff]
      %v189 = vld [vmem:[%s169 + $0x58] sm:$0xff]
      %v190 = vld [vmem:[%s169 + $0x60] sm:$0xff]
      %v191 = vld [vmem:[%s169 + $0x68] sm:$0xff]
      %v192 = vld [vmem:[%s169 + $0x70] sm:$0xff]
      %v193 = vld [vmem:[%s169 + $0x78] sm:$0xff]
      %v194 = vld [vmem:[%s169 + $0x80] sm:$0xff]
      %v195 = vld [vmem:[%s169 + $0x88] sm:$0xff]
      %v196 = vld [vmem:[%s169 + $0x90] sm:$0xff]
      %v197 = vld [vmem:[%s169 + $0x98] sm:$0xff]
      %v198 = vld [vmem:[%s169 + $0xa0] sm:$0xff]
      %v199 = vld [vmem:[%s169 + $0xa8] sm:$0xff]
      %v200 = vld [vmem:[%s169 + $0xb0] sm:$0xff]
      %v201 = vld [vmem:[%s169 + $0xb8] sm:$0xff]
      %v202 = vld [vmem:[%s169 + $0xc0] sm:$0xff]
      %v203 = vld [vmem:[%s169 + $0xc8] sm:$0xff]
      %v204 = vld [vmem:[%s169 + $0xd0] sm:$0xff]
      %v205 = vld [vmem:[%s169 + $0xd8] sm:$0xff]
      %v206 = vld [vmem:[%s169 + $0xe0] sm:$0xff]
      %v207 = vld [vmem:[%s169 + $0xe8] sm:$0xff]
      %v208 = vld [vmem:[%s169 + $0xf0] sm:$0xff]
      %v209 = vld [vmem:[%s169 + $0xf8] sm:$0xff]
      %v210 = vld [vmem:[%s1] sm:$0xf]
      %v211 = vld [vmem:[%s1 + $0x4] sm:$0xf]
      %v212 = vld [vmem:[%s1 + $0x8] sm:$0xf]
      %v213 = vld [vmem:[%s1 + $0xc] sm:$0xf]
      %v214 = vld [vmem:[%s1 + $0x10] sm:$0xf]
      %v215 = vld [vmem:[%s1 + $0x14] sm:$0xf]
      %v216 = vld [vmem:[%s1 + $0x18] sm:$0xf]
      %v217 = vld [vmem:[%s1 + $0x1c] sm:$0xf]
      %v218 = vld [vmem:[%s1 + $0x20] sm:$0xf]
      %v219 = vld [vmem:[%s1 + $0x24] sm:$0xf]
      %v220 = vld [vmem:[%s1 + $0x28] sm:$0xf]
      %v221 = vld [vmem:[%s1 + $0x2c] sm:$0xf]
      %v222 = vld [vmem:[%s1 + $0x30] sm:$0xf]
      %v223 = vld [vmem:[%s1 + $0x34] sm:$0xf]
      %v224 = vld [vmem:[%s1 + $0x38] sm:$0xf]
      %v225 = vld [vmem:[%s1 + $0x3c] sm:$0xf]
      %v226 = vld [vmem:[%s1 + $0x40] sm:$0xf]
      %v227 = vld [vmem:[%s1 + $0x44] sm:$0xf]
      %v228 = vld [vmem:[%s2] sm:$0x1]
      %v230 = vlaneseq
      %v231 = vshrl.u32 %v230, 7
      %v232 = vsub.s32 0, %v231
      %v233 = vrot.slane %v228, %v232
      %v267 = vunpack.c.l.b16 %v178
      %v268 = vunpack.c.h.b16 %v178
      %v269 = vunpack.c.l.b16 %v179
      %v270 = vunpack.c.h.b16 %v179
      %v271 = vunpack.c.l.b16 %v180
      %v272 = vunpack.c.h.b16 %v180
      %v273 = vunpack.c.l.b16 %v181
      %v274 = vunpack.c.h.b16 %v181
      %v275 = vunpack.c.l.b16 %v182
      %v276 = vunpack.c.h.b16 %v182
      %v277 = vunpack.c.l.b16 %v183
      %v278 = vunpack.c.h.b16 %v183
      %v279 = vunpack.c.l.b16 %v184
      %v280 = vunpack.c.h.b16 %v184
      %v281 = vunpack.c.l.b16 %v185
      %v282 = vunpack.c.h.b16 %v185
      %v283 = vunpack.c.l.b16 %v186
      %v284 = vunpack.c.h.b16 %v186
      %v285 = vunpack.c.l.b16 %v187
      %v286 = vunpack.c.h.b16 %v187
      %v287 = vunpack.c.l.b16 %v188
      %v288 = vunpack.c.h.b16 %v188
      %v289 = vunpack.c.l.b16 %v189
      %v290 = vunpack.c.h.b16 %v189
      %v291 = vunpack.c.l.b16 %v190
      %v292 = vunpack.c.h.b16 %v190
      %v293 = vunpack.c.l.b16 %v191
      %v294 = vunpack.c.h.b16 %v191
      %v295 = vunpack.c.l.b16 %v192
      %v296 = vunpack.c.h.b16 %v192
      %v297 = vunpack.c.l.b16 %v193
      %v298 = vunpack.c.h.b16 %v193
      %v299 = vunpack.c.l.b16 %v194
      %v300 = vunpack.c.h.b16 %v194
      %v301 = vunpack.c.l.b16 %v195
      %v302 = vunpack.c.h.b16 %v195
      %v303 = vunpack.c.l.b16 %v196
      %v304 = vunpack.c.h.b16 %v196
      %v305 = vunpack.c.l.b16 %v197
      %v306 = vunpack.c.h.b16 %v197
      %v307 = vunpack.c.l.b16 %v198
      %v308 = vunpack.c.h.b16 %v198
      %v309 = vunpack.c.l.b16 %v199
      %v310 = vunpack.c.h.b16 %v199
      %v311 = vunpack.c.l.b16 %v200
      %v312 = vunpack.c.h.b16 %v200
      %v313 = vunpack.c.l.b16 %v201
      %v314 = vunpack.c.h.b16 %v201
      %v315 = vunpack.c.l.b16 %v202
      %v316 = vunpack.c.h.b16 %v202
      %v317 = vunpack.c.l.b16 %v203
      %v318 = vunpack.c.h.b16 %v203
      %v319 = vunpack.c.l.b16 %v204
      %v320 = vunpack.c.h.b16 %v204
      %v321 = vunpack.c.l.b16 %v205
      %v322 = vunpack.c.h.b16 %v205
      %v323 = vunpack.c.l.b16 %v206
      %v324 = vunpack.c.h.b16 %v206
      %v325 = vunpack.c.l.b16 %v207
      %v326 = vunpack.c.h.b16 %v207
      %v327 = vunpack.c.l.b16 %v208
      %v328 = vunpack.c.h.b16 %v208
      %v329 = vunpack.c.l.b16 %v209
      %v330 = vunpack.c.h.b16 %v209
      %v331 = vpack.c.b16 %v269, %v267
      %v332 = vpack.c.b16 %v270, %v268
      %v333 = vpack.c.b16 %v273, %v271
      %v334 = vpack.c.b16 %v274, %v272
      %v335 = vpack.c.b16 %v277, %v275
      %v336 = vpack.c.b16 %v278, %v276
      %v337 = vpack.c.b16 %v281, %v279
      %v338 = vpack.c.b16 %v282, %v280
      %v339 = vpack.c.b16 %v285, %v283
      %v340 = vpack.c.b16 %v286, %v284
      %v341 = vpack.c.b16 %v289, %v287
      %v342 = vpack.c.b16 %v290, %v288
      %v343 = vpack.c.b16 %v293, %v291
      %v344 = vpack.c.b16 %v294, %v292
      %v345 = vpack.c.b16 %v297, %v295
      %v346 = vpack.c.b16 %v298, %v296
      %v347 = vpack.c.b16 %v301, %v299
      %v348 = vpack.c.b16 %v302, %v300
      %v349 = vpack.c.b16 %v305, %v303
      %v350 = vpack.c.b16 %v306, %v304
      %v351 = vpack.c.b16 %v309, %v307
      %v352 = vpack.c.b16 %v310, %v308
      %v353 = vpack.c.b16 %v313, %v311
      %v354 = vpack.c.b16 %v314, %v312
      %v355 = vpack.c.b16 %v317, %v315
      %v356 = vpack.c.b16 %v318, %v316
      %v357 = vpack.c.b16 %v321, %v319
      %v358 = vpack.c.b16 %v322, %v320
      %v359 = vpack.c.b16 %v325, %v323
      %v360 = vpack.c.b16 %v326, %v324
      %v361 = vpack.c.b16 %v329, %v327
      %v362 = vpack.c.b16 %v330, %v328
      %v397 = vunpack.c.l.b16 %v210
      %v398 = vunpack.c.l.b16 %v211
      %v399 = vunpack.c.l.b16 %v212
      %v400 = vunpack.c.l.b16 %v213
      %v401 = vunpack.c.l.b16 %v214
      %v402 = vunpack.c.l.b16 %v215
      %v403 = vunpack.c.l.b16 %v216
      %v404 = vunpack.c.l.b16 %v217
      %v405 = vunpack.c.l.b16 %v218
      %v406 = vunpack.c.l.b16 %v219
      %v407 = vunpack.c.l.b16 %v220
      %v408 = vunpack.c.l.b16 %v221
      %v409 = vunpack.c.l.b16 %v222
      %v410 = vunpack.c.l.b16 %v223
      %v411 = vunpack.c.l.b16 %v224
      %v412 = vunpack.c.l.b16 %v225
      %v413 = vunpack.c.l.b16 %v226
      %v414 = vunpack.c.l.b16 %v227
      %v415 = vpack.c.b16 %v398, %v397
      %v416 = vpack.c.b16 %v400, %v399
      %v417 = vpack.c.b16 %v402, %v401
      %v418 = vpack.c.b16 %v404, %v403
      %v419 = vpack.c.b16 %v406, %v405
      %v420 = vpack.c.b16 %v408, %v407
      %v421 = vpack.c.b16 %v410, %v409
      %v422 = vpack.c.b16 %v412, %v411
      %v423 = vpack.c.b16 %v414, %v413
      %vm433 = vcmask 130048
      %v435 = vsel %vm433, %v332, 0
      %v438 = vsel %vm433, %v334, 0
      %v441 = vsel %vm433, %v336, 0
      %v444 = vsel %vm433, %v338, 0
      %v447 = vsel %vm433, %v340, 0
      %v450 = vsel %vm433, %v342, 0
      %v453 = vsel %vm433, %v344, 0
      %v456 = vsel %vm433, %v346, 0
      %v459 = vsel %vm433, %v348, 0
      %v462 = vsel %vm433, %v350, 0
      %v465 = vsel %vm433, %v352, 0
      %v468 = vsel %vm433, %v354, 0
      %v471 = vsel %vm433, %v356, 0
      %v474 = vsel %vm433, %v358, 0
      %v477 = vsel %vm433, %v360, 0
      %v480 = vsel %vm433, %v362, 0
      %482 = vmatprep.subr.bf16.mxu0 0
      %483 = vmatpush1.bf16.msra.mxu0 %v415
      %484 = vmatprep.subr.bf16.mxu0 0
      %485 = vmatpush1.bf16.msra.mxu0 %v416
      %486 = vmatprep.subr.bf16.mxu0 0
      %487 = vmatpush1.bf16.msra.mxu0 %v417
      %488 = vmatprep.subr.bf16.mxu0 0
      %489 = vmatpush1.bf16.msra.mxu0 %v418
      %490 = vmatprep.subr.bf16.mxu0 0
      %491 = vmatpush1.bf16.msra.mxu0 %v419
      %492 = vmatprep.subr.bf16.mxu0 0
      %493 = vmatpush1.bf16.msra.mxu0 %v420
      %494 = vmatprep.subr.bf16.mxu0 0
      %495 = vmatpush1.bf16.msra.mxu0 %v421
      %496 = vmatprep.subr.bf16.mxu0 0
      %497 = vmatpush1.bf16.msra.mxu0 %v422
      %498 = vmatprep.subr.bf16.mxu0 0
      %499 = vmatpush1.bf16.msra.mxu0 %v423
      %500 = vmatprep.subr.bf16.mxu0 0
      %501 = vmatpush1.bf16.msra.mxu0 0
      %502 = vmatprep.subr.bf16.mxu0 0
      %503 = vmatpush1.bf16.msra.mxu0 0
      %504 = vmatprep.subr.bf16.mxu0 0
      %505 = vmatpush1.bf16.msra.mxu0 0
      %506 = vmatprep.subr.bf16.mxu0 0
      %507 = vmatpush1.bf16.msra.mxu0 0
      %508 = vmatprep.subr.bf16.mxu0 0
      %509 = vmatpush1.bf16.msra.mxu0 0
      %510 = vmatprep.subr.bf16.mxu0 0
      %511 = vmatpush1.bf16.msra.mxu0 0
      %512 = vmatprep.subr.bf16.mxu0 0
      %513 = vmatpush1.bf16.msra.mxu0 0
      %514 = vmatprep.mubr.bf16.mxu0 %v435
      %515 = vmatmul.mubr.bf16.gmra.mrb[0].mxu0 %v331
      %v516 = vpop.f32.mrb[0].mxu0
      %v517 = vadd.f32 %v233, %v516
      %v518 = vpop.f32.mrb[0].mxu0
      %v519 = vpop.f32.mrb[0].mxu0
      %v520 = vadd.f32 %v233, %v519
      %v521 = vpop.f32.mrb[0].mxu0
      %522 = vmatprep.mubr.bf16.mxu0 %v438
      %523 = vmatmul.mubr.bf16.gmra.mrb[0].mxu0 %v333
      %v524 = vpop.f32.mrb[0].mxu0
      %v525 = vadd.f32 %v233, %v524
      %v526 = vpop.f32.mrb[0].mxu0
      %v527 = vpop.f32.mrb[0].mxu0
      %v528 = vadd.f32 %v233, %v527
      %v529 = vpop.f32.mrb[0].mxu0
      %530 = vmatprep.mubr.bf16.mxu0 %v441
      %531 = vmatmul.mubr.bf16.gmra.mrb[0].mxu0 %v335
      %v532 = vpop.f32.mrb[0].mxu0
      %v533 = vadd.f32 %v233, %v532
      %v534 = vpop.f32.mrb[0].mxu0
      %v535 = vpop.f32.mrb[0].mxu0
      %v536 = vadd.f32 %v233, %v535
      %v537 = vpop.f32.mrb[0].mxu0
      %538 = vmatprep.mubr.bf16.mxu0 %v444
      %539 = vmatmul.mubr.bf16.gmra.mrb[0].mxu0 %v337
      %v540 = vpop.f32.mrb[0].mxu0
      %v541 = vadd.f32 %v233, %v540
      %v542 = vpop.f32.mrb[0].mxu0
      %v543 = vpop.f32.mrb[0].mxu0
      %v544 = vadd.f32 %v233, %v543
      %v545 = vpop.f32.mrb[0].mxu0
      %546 = vmatprep.mubr.bf16.mxu0 %v447
      %547 = vmatmul.mubr.bf16.gmra.mrb[0].mxu0 %v339
      %v548 = vpop.f32.mrb[0].mxu0
      %v549 = vadd.f32 %v233, %v548
      %v550 = vpop.f32.mrb[0].mxu0
      %v551 = vpop.f32.mrb[0].mxu0
      %v552 = vadd.f32 %v233, %v551
      %v553 = vpop.f32.mrb[0].mxu0
      %554 = vmatprep.mubr.bf16.mxu0 %v450
      %555 = vmatmul.mubr.bf16.gmra.mrb[0].mxu0 %v341
      %v556 = vpop.f32.mrb[0].mxu0
      %v557 = vadd.f32 %v233, %v556
      %v558 = vpop.f32.mrb[0].mxu0
      %v559 = vpop.f32.mrb[0].mxu0
      %v560 = vadd.f32 %v233, %v559
      %v561 = vpop.f32.mrb[0].mxu0
      %562 = vmatprep.mubr.bf16.mxu0 %v453
      %563 = vmatmul.mubr.bf16.gmra.mrb[0].mxu0 %v343
      %v564 = vpop.f32.mrb[0].mxu0
      %v565 = vadd.f32 %v233, %v564
      %v566 = vpop.f32.mrb[0].mxu0
      %v567 = vpop.f32.mrb[0].mxu0
      %v568 = vadd.f32 %v233, %v567
      %v569 = vpop.f32.mrb[0].mxu0
      %570 = vmatprep.mubr.bf16.mxu0 %v456
      %571 = vmatmul.mubr.bf16.gmra.mrb[0].mxu0 %v345
      %v572 = vpop.f32.mrb[0].mxu0
      %v573 = vadd.f32 %v233, %v572
      %v574 = vpop.f32.mrb[0].mxu0
      %v575 = vpop.f32.mrb[0].mxu0
      %v576 = vadd.f32 %v233, %v575
      %v577 = vpop.f32.mrb[0].mxu0
      %578 = vmatprep.mubr.bf16.mxu0 %v459
      %579 = vmatmul.mubr.bf16.gmra.mrb[0].mxu0 %v347
      %v580 = vpop.f32.mrb[0].mxu0
      %v581 = vadd.f32 %v233, %v580
      %v582 = vpop.f32.mrb[0].mxu0
      %v583 = vpop.f32.mrb[0].mxu0
      %v584 = vadd.f32 %v233, %v583
      %v585 = vpop.f32.mrb[0].mxu0
      %586 = vmatprep.mubr.bf16.mxu0 %v462
      %587 = vmatmul.mubr.bf16.gmra.mrb[0].mxu0 %v349
      %v588 = vpop.f32.mrb[0].mxu0
      %v589 = vadd.f32 %v233, %v588
      %v590 = vpop.f32.mrb[0].mxu0
      %v591 = vpop.f32.mrb[0].mxu0
      %v592 = vadd.f32 %v233, %v591
      %v593 = vpop.f32.mrb[0].mxu0
      %594 = vmatprep.mubr.bf16.mxu0 %v465
      %595 = vmatmul.mubr.bf16.gmra.mrb[0].mxu0 %v351
      %v596 = vpop.f32.mrb[0].mxu0
      %v597 = vadd.f32 %v233, %v596
      %v598 = vpop.f32.mrb[0].mxu0
      %v599 = vpop.f32.mrb[0].mxu0
      %v600 = vadd.f32 %v233, %v599
      %v601 = vpop.f32.mrb[0].mxu0
      %602 = vmatprep.mubr.bf16.mxu0 %v468
      %603 = vmatmul.mubr.bf16.gmra.mrb[0].mxu0 %v353
      %v604 = vpop.f32.mrb[0].mxu0
      %v605 = vadd.f32 %v233, %v604
      %v606 = vpop.f32.mrb[0].mxu0
      %v607 = vpop.f32.mrb[0].mxu0
      %v608 = vadd.f32 %v233, %v607
      %v609 = vpop.f32.mrb[0].mxu0
      %610 = vmatprep.mubr.bf16.mxu0 %v471
      %611 = vmatmul.mubr.bf16.gmra.mrb[0].mxu0 %v355
      %v612 = vpop.f32.mrb[0].mxu0
      %v613 = vadd.f32 %v233, %v612
      %v614 = vpop.f32.mrb[0].mxu0
      %v615 = vpop.f32.mrb[0].mxu0
      %v616 = vadd.f32 %v233, %v615
      %v617 = vpop.f32.mrb[0].mxu0
      %618 = vmatprep.mubr.bf16.mxu0 %v474
      %619 = vmatmul.mubr.bf16.gmra.mrb[0].mxu0 %v357
      %v620 = vpop.f32.mrb[0].mxu0
      %v621 = vadd.f32 %v233, %v620
      %v622 = vpop.f32.mrb[0].mxu0
      %v623 = vpop.f32.mrb[0].mxu0
      %v624 = vadd.f32 %v233, %v623
      %v625 = vpop.f32.mrb[0].mxu0
      %626 = vmatprep.mubr.bf16.mxu0 %v477
      %627 = vmatmul.mubr.bf16.gmra.mrb[0].mxu0 %v359
      %v628 = vpop.f32.mrb[0].mxu0
      %v629 = vadd.f32 %v233, %v628
      %v630 = vpop.f32.mrb[0].mxu0
      %v631 = vpop.f32.mrb[0].mxu0
      %v632 = vadd.f32 %v233, %v631
      %v633 = vpop.f32.mrb[0].mxu0
      %634 = vmatprep.mubr.bf16.mxu0 %v480
      %635 = vmatmul.mubr.bf16.gmra.mrb[0].mxu0 %v361
      %v636 = vpop.f32.mrb[0].mxu0
      %v637 = vadd.f32 %v233, %v636
      %v638 = vpop.f32.mrb[0].mxu0
      %v639 = vpop.f32.mrb[0].mxu0
      %v640 = vadd.f32 %v233, %v639
      %v641 = vpop.f32.mrb[0].mxu0
      %642 = vdwg.mxu0
      %v643 = vmax.f32 %v517, 0.0
      %v644 = vmax.f32 %v520, 0.0
      %v645 = vmax.f32 %v525, 0.0
      %v646 = vmax.f32 %v528, 0.0
      %v647 = vmax.f32 %v533, 0.0
      %v648 = vmax.f32 %v536, 0.0
      %v649 = vmax.f32 %v541, 0.0
      %v650 = vmax.f32 %v544, 0.0
      %v651 = vmax.f32 %v549, 0.0
      %v652 = vmax.f32 %v552, 0.0
      %v653 = vmax.f32 %v557, 0.0
      %v654 = vmax.f32 %v560, 0.0
      %v655 = vmax.f32 %v565, 0.0
      %v656 = vmax.f32 %v568, 0.0
      %v657 = vmax.f32 %v573, 0.0
      %v658 = vmax.f32 %v576, 0.0
      %v659 = vmax.f32 %v581, 0.0
      %v660 = vmax.f32 %v584, 0.0
      %v661 = vmax.f32 %v589, 0.0
      %v662 = vmax.f32 %v592, 0.0
      %v663 = vmax.f32 %v597, 0.0
      %v664 = vmax.f32 %v600, 0.0
      %v665 = vmax.f32 %v605, 0.0
      %v666 = vmax.f32 %v608, 0.0
      %v667 = vmax.f32 %v613, 0.0
      %v668 = vmax.f32 %v616, 0.0
      %v669 = vmax.f32 %v621, 0.0
      %v670 = vmax.f32 %v624, 0.0
      %v671 = vmax.f32 %v629, 0.0
      %v672 = vmax.f32 %v632, 0.0
      %v673 = vmax.f32 %v637, 0.0
      %v674 = vmax.f32 %v640, 0.0
      %v675 = vpack.c.bf16 %v644, %v643
      %v676 = vpack.c.bf16 %v646, %v645
      %v677 = vpack.c.bf16 %v648, %v647
      %v678 = vpack.c.bf16 %v650, %v649
      %v679 = vpack.c.bf16 %v652, %v651
      %v680 = vpack.c.bf16 %v654, %v653
      %v681 = vpack.c.bf16 %v656, %v655
      %v682 = vpack.c.bf16 %v658, %v657
      %v683 = vpack.c.bf16 %v660, %v659
      %v684 = vpack.c.bf16 %v662, %v661
      %v685 = vpack.c.bf16 %v664, %v663
      %v686 = vpack.c.bf16 %v666, %v665
      %v687 = vpack.c.bf16 %v668, %v667
      %v688 = vpack.c.bf16 %v670, %v669
      %v689 = vpack.c.bf16 %v672, %v671
      %v690 = vpack.c.bf16 %v674, %v673
      %v707 = vunpack.c.l.b16 %v675
      %v708 = vunpack.c.h.b16 %v675
      %v709 = vunpack.c.l.b16 %v676
      %v710 = vunpack.c.h.b16 %v676
      %v711 = vunpack.c.l.b16 %v677
      %v712 = vunpack.c.h.b16 %v677
      %v713 = vunpack.c.l.b16 %v678
      %v714 = vunpack.c.h.b16 %v678
      %v715 = vunpack.c.l.b16 %v679
      %v716 = vunpack.c.h.b16 %v679
      %v717 = vunpack.c.l.b16 %v680
      %v718 = vunpack.c.h.b16 %v680
      %v719 = vunpack.c.l.b16 %v681
      %v720 = vunpack.c.h.b16 %v681
      %v721 = vunpack.c.l.b16 %v682
      %v722 = vunpack.c.h.b16 %v682
      %v723 = vunpack.c.l.b16 %v683
      %v724 = vunpack.c.h.b16 %v683
      %v725 = vunpack.c.l.b16 %v684
      %v726 = vunpack.c.h.b16 %v684
      %v727 = vunpack.c.l.b16 %v685
      %v728 = vunpack.c.h.b16 %v685
      %v729 = vunpack.c.l.b16 %v686
      %v730 = vunpack.c.h.b16 %v686
      %v731 = vunpack.c.l.b16 %v687
      %v732 = vunpack.c.h.b16 %v687
      %v733 = vunpack.c.l.b16 %v688
      %v734 = vunpack.c.h.b16 %v688
      %v735 = vunpack.c.l.b16 %v689
      %v736 = vunpack.c.h.b16 %v689
      %v737 = vunpack.c.l.b16 %v690
      %v738 = vunpack.c.h.b16 %v690
      %v739 = vpack.c.b16 %v707, %v707
      %v740 = vpack.c.b16 %v708, %v708
      %v741 = vpack.c.b16 %v709, %v709
      %v742 = vpack.c.b16 %v710, %v710
      %v743 = vpack.c.b16 %v711, %v711
      %v744 = vpack.c.b16 %v712, %v712
      %v745 = vpack.c.b16 %v713, %v713
      %v746 = vpack.c.b16 %v714, %v714
      %v747 = vpack.c.b16 %v715, %v715
      %v748 = vpack.c.b16 %v716, %v716
      %v749 = vpack.c.b16 %v717, %v717
      %v750 = vpack.c.b16 %v718, %v718
      %v751 = vpack.c.b16 %v719, %v719
      %v752 = vpack.c.b16 %v720, %v720
      %v753 = vpack.c.b16 %v721, %v721
      %v754 = vpack.c.b16 %v722, %v722
      %v755 = vpack.c.b16 %v723, %v723
      %v756 = vpack.c.b16 %v724, %v724
      %v757 = vpack.c.b16 %v725, %v725
      %v758 = vpack.c.b16 %v726, %v726
      %v759 = vpack.c.b16 %v727, %v727
      %v760 = vpack.c.b16 %v728, %v728
      %v761 = vpack.c.b16 %v729, %v729
      %v762 = vpack.c.b16 %v730, %v730
      %v763 = vpack.c.b16 %v731, %v731
      %v764 = vpack.c.b16 %v732, %v732
      %v765 = vpack.c.b16 %v733, %v733
      %v766 = vpack.c.b16 %v734, %v734
      %v767 = vpack.c.b16 %v735, %v735
      %v768 = vpack.c.b16 %v736, %v736
      %v769 = vpack.c.b16 %v737, %v737
      %v770 = vpack.c.b16 %v738, %v738
      %803 = vst [vmem:[%s175] sm:$0xf] %v739
      %804 = vst [vmem:[%s175 + $0x4] sm:$0xf] %v740
      %805 = vst [vmem:[%s175 + $0x8] sm:$0xf] %v741
      %806 = vst [vmem:[%s175 + $0xc] sm:$0xf] %v742
      %807 = vst [vmem:[%s175 + $0x10] sm:$0xf] %v743
      %808 = vst [vmem:[%s175 + $0x14] sm:$0xf] %v744
      %809 = vst [vmem:[%s175 + $0x18] sm:$0xf] %v745
      %810 = vst [vmem:[%s175 + $0x1c] sm:$0xf] %v746
      %811 = vst [vmem:[%s175 + $0x20] sm:$0xf] %v747
      %812 = vst [vmem:[%s175 + $0x24] sm:$0xf] %v748
      %813 = vst [vmem:[%s175 + $0x28] sm:$0xf] %v749
      %814 = vst [vmem:[%s175 + $0x2c] sm:$0xf] %v750
      %815 = vst [vmem:[%s175 + $0x30] sm:$0xf] %v751
      %816 = vst [vmem:[%s175 + $0x34] sm:$0xf] %v752
      %817 = vst [vmem:[%s175 + $0x38] sm:$0xf] %v753
      %818 = vst [vmem:[%s175 + $0x3c] sm:$0xf] %v754
      %819 = vst [vmem:[%s175 + $0x40] sm:$0xf] %v755
      %820 = vst [vmem:[%s175 + $0x44] sm:$0xf] %v756
      %821 = vst [vmem:[%s175 + $0x48] sm:$0xf] %v757
      %822 = vst [vmem:[%s175 + $0x4c] sm:$0xf] %v758
      %823 = vst [vmem:[%s175 + $0x50] sm:$0xf] %v759
      %824 = vst [vmem:[%s175 + $0x54] sm:$0xf] %v760
      %825 = vst [vmem:[%s175 + $0x58] sm:$0xf] %v761
      %826 = vst [vmem:[%s175 + $0x5c] sm:$0xf] %v762
      %827 = vst [vmem:[%s175 + $0x60] sm:$0xf] %v763
      %828 = vst [vmem:[%s175 + $0x64] sm:$0xf] %v764
      %829 = vst [vmem:[%s175 + $0x68] sm:$0xf] %v765
      %830 = vst [vmem:[%s175 + $0x6c] sm:$0xf] %v766
      %831 = vst [vmem:[%s175 + $0x70] sm:$0xf] %v767
      %832 = vst [vmem:[%s175 + $0x74] sm:$0xf] %v768
      %833 = vst [vmem:[%s175 + $0x78] sm:$0xf] %v769
      %834 = vst [vmem:[%s175 + $0x7c] sm:$0xf] %v770
      %s835 = smul.u32 32, %s14
      %p836 = scmp.lt.s32.totalorder %s835, 63
      %s837 = scalar_select %p836, %s835, 63
      %s838 = smul.addr %s837, 4
      %s839 = scalar_lea.vmem %s3, %s838
      // Predicated region
      $region33: #{forward.4} parent=31 // pred_check
        %p840 = pneg %p100
      $region34: #{forward.4} parent=31 // pred_check_branch
        %842 = sbr.rel (%p840) target = $region36
      $region35: #{forward.4} parent=31 // pred_region
        %s843 = smul.u32 32, %s14
      $region36: #{forward.4} parent=31 // pred_fallthru
        _
    $region32: #{forward.4} parent=5 // pred_fallthru
      _
    %p844 = scmp.le.s32.totalorder 2, %s9
    // Predicated region
    $region37: #{forward.4} parent=5 // pred_check
      %p845 = pneg %p844
    $region38: #{forward.4} parent=5 // pred_check_branch
      %847 = sbr.rel (%p845) target = $region40
    $region39: #{forward.4} parent=5 // pred_region
      %s848 = ssub.s32 %s9, 2
      // Predicated region
      $region41: #{forward.4} parent=39 // pred_check
        %p849 = pneg %p106
      $region42: #{forward.4} parent=39 // pred_check_branch
        %851 = sbr.rel (%p849) target = $region44
      $region43: #{forward.4} parent=39 // pred_region
        %s852 = smul.u32 32, %s15
        %p853 = scmp.lt.s32.totalorder %s852, 63
        %s854 = scalar_select %p853, %s852, 63
        %s855 = smul.addr %s854, 4
        %s856 = scalar_lea.vmem %s3, %s855
      $region44: #{forward.4} parent=39 // pred_fallthru
        _
    $region40: #{forward.4} parent=5 // pred_fallthru
      _
  $region6: #{forward.4} parent=0 // loop_footer
    %s13 = sadd.s32 1, %s9
  $region7: #{forward.4} parent=0 // loop_footer_branch
    %8 = sbr.rel target = $region3
  $region8: #{forward.4} parent=0 // loop_exit
    _

// kernel: forward.6
$region0: #{forward.6}
  #allocation0 [shape = 'u32[]', space=smem, size = 0x4, offset = 0x4, fixed_abs, tag = 'smem constant byte address 0x4 - core index']
  #allocation1 [shape = 'u32[144,128]{1,0:T(1,128)}', space=vmem, size = 0x12000, scoped, tag = 'internal scratch']
  %s0 = inlined_call_operand.vmem [shape: bf16[128,144], index: 0, kind: input, shape index: {}]
  %s1 = inlined_call_operand.vmem [shape: bf16[144,128], index: 1, kind: input, shape index: {}]
  %s2 = inlined_call_operand.vmem [shape: f32[1,128], index: 2, kind: input, shape index: {}]
  %s3 = inlined_call_operand.vmem [shape: bf16[128,128], index: 3, kind: output, shape index: {}]
  %s4 = sld [smem:[#allocation0]]
  $region22: #{forward.6} parent=0
    _
  %s6 = ssub.s32 1, %s4
  %s7 = scalar_select 0, %s6, %s4
  // Predicated region
  $region2: #{forward.6} parent=0 // pred_check
    _
  $region3: #{forward.6} parent=0 // pred_check_branch
    %9 = sbr.rel (0) target = $region5
  $region4: #{forward.6} parent=0 // pred_region
    _
  $region5: #{forward.6} parent=0 // pred_fallthru
    _
  // Predicated region
  $region6: #{forward.6} parent=0 // pred_check
    _
  $region7: #{forward.6} parent=0 // pred_check_branch
    %11 = sbr.rel (0) target = $region9
  $region8: #{forward.6} parent=0 // pred_region
    _
  $region9: #{forward.6} parent=0 // pred_fallthru
    _
  // Predicated region
  $region10: #{forward.6} parent=0 // pred_check
    _
  $region11: #{forward.6} parent=0 // pred_check_branch
    %13 = sbr.rel (0) target = $region13
  $region12: #{forward.6} parent=0 // pred_region
    _
  $region13: #{forward.6} parent=0 // pred_fallthru
    _
  %v15 = vld [vmem:[%s0] sm:$0xff]
  %v16 = vld [vmem:[%s0 + $0x8] sm:$0xff]
  %v17 = vld [vmem:[%s0 + $0x10] sm:$0xff]
  %v18 = vld [vmem:[%s0 + $0x18] sm:$0xff]
  %v19 = vld [vmem:[%s0 + $0x20] sm:$0xff]
  %v20 = vld [vmem:[%s0 + $0x28] sm:$0xff]
  %v21 = vld [vmem:[%s0 + $0x30] sm:$0xff]
  %v22 = vld [vmem:[%s0 + $0x38] sm:$0xff]
  %v23 = vld [vmem:[%s0 + $0x40] sm:$0xff]
  %v24 = vld [vmem:[%s0 + $0x48] sm:$0xff]
  %v25 = vld [vmem:[%s0 + $0x50] sm:$0xff]
  %v26 = vld [vmem:[%s0 + $0x58] sm:$0xff]
  %v27 = vld [vmem:[%s0 + $0x60] sm:$0xff]
  %v28 = vld [vmem:[%s0 + $0x68] sm:$0xff]
  %v29 = vld [vmem:[%s0 + $0x70] sm:$0xff]
  %v30 = vld [vmem:[%s0 + $0x78] sm:$0xff]
  %v31 = vld [vmem:[%s1] sm:$0xf]
  %v32 = vld [vmem:[%s1 + $0x4] sm:$0xf]
  %v33 = vld [vmem:[%s1 + $0x8] sm:$0xf]
  %v34 = vld [vmem:[%s1 + $0xc] sm:$0xf]
  %v35 = vld [vmem:[%s1 + $0x10] sm:$0xf]
  %v36 = vld [vmem:[%s1 + $0x14] sm:$0xf]
  %v37 = vld [vmem:[%s1 + $0x18] sm:$0xf]
  %v38 = vld [vmem:[%s1 + $0x1c] sm:$0xf]
  %v39 = vld [vmem:[%s1 + $0x20] sm:$0xf]
  %v40 = vld [vmem:[%s1 + $0x24] sm:$0xf]
  %v41 = vld [vmem:[%s1 + $0x28] sm:$0xf]
  %v42 = vld [vmem:[%s1 + $0x2c] sm:$0xf]
  %v43 = vld [vmem:[%s1 + $0x30] sm:$0xf]
  %v44 = vld [vmem:[%s1 + $0x34] sm:$0xf]
  %v45 = vld [vmem:[%s1 + $0x38] sm:$0xf]
  %v46 = vld [vmem:[%s1 + $0x3c] sm:$0xf]
  %v47 = vld [vmem:[%s1 + $0x40] sm:$0xf]
  %v48 = vld [vmem:[%s1 + $0x44] sm:$0xf]
  %v49 = vld [vmem:[%s2] sm:$0x1]
  %v51 = vlaneseq
  %v52 = vshrl.u32 %v51, 7
  %v53 = vsub.s32 0, %v52
  %v54 = vrot.slane %v49, %v53
  %v72 = vunpack.c.l.b16 %v15
  %v73 = vunpack.c.h.b16 %v15
  %v74 = vunpack.c.l.b16 %v16
  %v75 = vunpack.c.h.b16 %v16
  %v76 = vunpack.c.l.b16 %v17
  %v77 = vunpack.c.h.b16 %v17
  %v78 = vunpack.c.l.b16 %v18
  %v79 = vunpack.c.h.b16 %v18
  %v80 = vunpack.c.l.b16 %v19
  %v81 = vunpack.c.h.b16 %v19
  %v82 = vunpack.c.l.b16 %v20
  %v83 = vunpack.c.h.b16 %v20
  %v84 = vunpack.c.l.b16 %v21
  %v85 = vunpack.c.h.b16 %v21
  %v86 = vunpack.c.l.b16 %v22
  %v87 = vunpack.c.h.b16 %v22
  %v88 = vunpack.c.l.b16 %v23
  %v89 = vunpack.c.h.b16 %v23
  %v90 = vunpack.c.l.b16 %v24
  %v91 = vunpack.c.h.b16 %v24
  %v92 = vunpack.c.l.b16 %v25
  %v93 = vunpack.c.h.b16 %v25
  %v94 = vunpack.c.l.b16 %v26
  %v95 = vunpack.c.h.b16 %v26
  %v96 = vunpack.c.l.b16 %v27
  %v97 = vunpack.c.h.b16 %v27
  %v98 = vunpack.c.l.b16 %v28
  %v99 = vunpack.c.h.b16 %v28
  %v100 = vunpack.c.l.b16 %v29
  %v101 = vunpack.c.h.b16 %v29
  %v102 = vunpack.c.l.b16 %v30
  %v103 = vunpack.c.h.b16 %v30
  %v104 = vpack.c.b16 %v74, %v72
  %v105 = vpack.c.b16 %v75, %v73
  %v106 = vpack.c.b16 %v78, %v76
  %v107 = vpack.c.b16 %v79, %v77
  %v108 = vpack.c.b16 %v82, %v80
  %v109 = vpack.c.b16 %v83, %v81
  %v110 = vpack.c.b16 %v86, %v84
  %v111 = vpack.c.b16 %v87, %v85
  %v112 = vpack.c.b16 %v90, %v88
  %v113 = vpack.c.b16 %v91, %v89
  %v114 = vpack.c.b16 %v94, %v92
  %v115 = vpack.c.b16 %v95, %v93
  %v116 = vpack.c.b16 %v98, %v96
  %v117 = vpack.c.b16 %v99, %v97
  %v118 = vpack.c.b16 %v102, %v100
  %v119 = vpack.c.b16 %v103, %v101
  %v146 = vunpack.c.l.b16 %v31
  %v147 = vunpack.c.l.b16 %v32
  %v148 = vunpack.c.l.b16 %v33
  %v149 = vunpack.c.l.b16 %v34
  %v150 = vunpack.c.l.b16 %v35
  %v151 = vunpack.c.l.b16 %v36
  %v152 = vunpack.c.l.b16 %v37
  %v153 = vunpack.c.l.b16 %v38
  %v154 = vunpack.c.l.b16 %v39
  %v155 = vunpack.c.l.b16 %v40
  %v156 = vunpack.c.l.b16 %v41
  %v157 = vunpack.c.l.b16 %v42
  %v158 = vunpack.c.l.b16 %v43
  %v159 = vunpack.c.l.b16 %v44
  %v160 = vunpack.c.l.b16 %v45
  %v161 = vunpack.c.l.b16 %v46
  %v162 = vunpack.c.l.b16 %v47
  %v163 = vunpack.c.l.b16 %v48
  %v164 = vpack.c.b16 %v147, %v146
  %v165 = vpack.c.b16 %v149, %v148
  %v166 = vpack.c.b16 %v151, %v150
  %v167 = vpack.c.b16 %v153, %v152
  %v168 = vpack.c.b16 %v155, %v154
  %v169 = vpack.c.b16 %v157, %v156
  %v170 = vpack.c.b16 %v159, %v158
  %v171 = vpack.c.b16 %v161, %v160
  %v172 = vpack.c.b16 %v163, %v162
  %vm182 = vcmask 130048
  %v184 = vsel %vm182, %v105, 0
  %v187 = vsel %vm182, %v107, 0
  %v190 = vsel %vm182, %v109, 0
  %v193 = vsel %vm182, %v111, 0
  %v196 = vsel %vm182, %v113, 0
  %v199 = vsel %vm182, %v115, 0
  %v202 = vsel %vm182, %v117, 0
  %v205 = vsel %vm182, %v119, 0
  %207 = vmatprep.subr.bf16.mxu0 0
  %208 = vmatpush1.bf16.msra.mxu0 %v164
  %209 = vmatprep.subr.bf16.mxu0 0
  %210 = vmatpush1.bf16.msra.mxu0 %v165
  %211 = vmatprep.subr.bf16.mxu0 0
  %212 = vmatpush1.bf16.msra.mxu0 %v166
  %213 = vmatprep.subr.bf16.mxu0 0
  %214 = vmatpush1.bf16.msra.mxu0 %v167
  %215 = vmatprep.subr.bf16.mxu0 0
  %216 = vmatpush1.bf16.msra.mxu0 %v168
  %217 = vmatprep.subr.bf16.mxu0 0
  %218 = vmatpush1.bf16.msra.mxu0 %v169
  %219 = vmatprep.subr.bf16.mxu0 0
  %220 = vmatpush1.bf16.msra.mxu0 %v170
  %221 = vmatprep.subr.bf16.mxu0 0
  %222 = vmatpush1.bf16.msra.mxu0 %v171
  %223 = vmatprep.subr.bf16.mxu0 0
  %224 = vmatpush1.bf16.msra.mxu0 %v172
  %225 = vmatprep.subr.bf16.mxu0 0
  %226 = vmatpush1.bf16.msra.mxu0 0
  %227 = vmatprep.subr.bf16.mxu0 0
  %228 = vmatpush1.bf16.msra.mxu0 0
  %229 = vmatprep.subr.bf16.mxu0 0
  %230 = vmatpush1.bf16.msra.mxu0 0
  %231 = vmatprep.subr.bf16.mxu0 0
  %232 = vmatpush1.bf16.msra.mxu0 0
  %233 = vmatprep.subr.bf16.mxu0 0
  %234 = vmatpush1.bf16.msra.mxu0 0
  %235 = vmatprep.subr.bf16.mxu0 0
  %236 = vmatpush1.bf16.msra.mxu0 0
  %237 = vmatprep.subr.bf16.mxu0 0
  %238 = vmatpush1.bf16.msra.mxu0 0
  %239 = vmatprep.mubr.bf16.mxu0 %v184
  %240 = vmatmul.mubr.bf16.gmra.mrb[0].mxu0 %v104
  %v241 = vpop.f32.mrb[0].mxu0
  %v242 = vadd.f32 %v54, %v241
  %v243 = vpop.f32.mrb[0].mxu0
  %v244 = vpop.f32.mrb[0].mxu0
  %v245 = vadd.f32 %v54, %v244
  %v246 = vpop.f32.mrb[0].mxu0
  %247 = vmatprep.mubr.bf16.mxu0 %v187
  %248 = vmatmul.mubr.bf16.gmra.mrb[0].mxu0 %v106
  %v249 = vpop.f32.mrb[0].mxu0
  %v250 = vadd.f32 %v54, %v249
  %v251 = vpop.f32.mrb[0].mxu0
  %v252 = vpop.f32.mrb[0].mxu0
  %v253 = vadd.f32 %v54, %v252
  %v254 = vpop.f32.mrb[0].mxu0
  %255 = vmatprep.mubr.bf16.mxu0 %v190
  %256 = vmatmul.mubr.bf16.gmra.mrb[0].mxu0 %v108
  %v257 = vpop.f32.mrb[0].mxu0
  %v258 = vadd.f32 %v54, %v257
  %v259 = vpop.f32.mrb[0].mxu0
  %v260 = vpop.f32.mrb[0].mxu0
  %v261 = vadd.f32 %v54, %v260
  %v262 = vpop.f32.mrb[0].mxu0
  %263 = vmatprep.mubr.bf16.mxu0 %v193
  %264 = vmatmul.mubr.bf16.gmra.mrb[0].mxu0 %v110
  %v265 = vpop.f32.mrb[0].mxu0
  %v266 = vadd.f32 %v54, %v265
  %v267 = vpop.f32.mrb[0].mxu0
  %v268 = vpop.f32.mrb[0].mxu0
  %v269 = vadd.f32 %v54, %v268
  %v270 = vpop.f32.mrb[0].mxu0
  %271 = vmatprep.mubr.bf16.mxu0 %v196
  %272 = vmatmul.mubr.bf16.gmra.mrb[0].mxu0 %v112
  %v273 = vpop.f32.mrb[0].mxu0
  %v274 = vadd.f32 %v54, %v273
  %v275 = vpop.f32.mrb[0].mxu0
  %v276 = vpop.f32.mrb[0].mxu0
  %v277 = vadd.f32 %v54, %v276
  %v278 = vpop.f32.mrb[0].mxu0
  %279 = vmatprep.mubr.bf16.mxu0 %v199
  %280 = vmatmul.mubr.bf16.gmra.mrb[0].mxu0 %v114
  %v281 = vpop.f32.mrb[0].mxu0
  %v282 = vadd.f32 %v54, %v281
  %v283 = vpop.f32.mrb[0].mxu0
  %v284 = vpop.f32.mrb[0].mxu0
  %v285 = vadd.f32 %v54, %v284
  %v286 = vpop.f32.mrb[0].mxu0
  %287 = vmatprep.mubr.bf16.mxu0 %v202
  %288 = vmatmul.mubr.bf16.gmra.mrb[0].mxu0 %v116
  %v289 = vpop.f32.mrb[0].mxu0
  %v290 = vadd.f32 %v54, %v289
  %v291 = vpop.f32.mrb[0].mxu0
  %v292 = vpop.f32.mrb[0].mxu0
  %v293 = vadd.f32 %v54, %v292
  %v294 = vpop.f32.mrb[0].mxu0
  %295 = vmatprep.mubr.bf16.mxu0 %v205
  %296 = vmatmul.mubr.bf16.gmra.mrb[0].mxu0 %v118
  %v297 = vpop.f32.mrb[0].mxu0
  %v298 = vadd.f32 %v54, %v297
  %v299 = vpop.f32.mrb[0].mxu0
  %v300 = vpop.f32.mrb[0].mxu0
  %v301 = vadd.f32 %v54, %v300
  %v302 = vpop.f32.mrb[0].mxu0
  %303 = vdwg.mxu0
  %v304 = vmax.f32 %v242, 0.0
  %v305 = vmax.f32 %v245, 0.0
  %v306 = vmax.f32 %v250, 0.0
  %v307 = vmax.f32 %v253, 0.0
  %v308 = vmax.f32 %v258, 0.0
  %v309 = vmax.f32 %v261, 0.0
  %v310 = vmax.f32 %v266, 0.0
  %v311 = vmax.f32 %v269, 0.0
  %v312 = vmax.f32 %v274, 0.0
  %v313 = vmax.f32 %v277, 0.0
  %v314 = vmax.f32 %v282, 0.0
  %v315 = vmax.f32 %v285, 0.0
  %v316 = vmax.f32 %v290, 0.0
  %v317 = vmax.f32 %v293, 0.0
  %v318 = vmax.f32 %v298, 0.0
  %v319 = vmax.f32 %v301, 0.0
  %v320 = vpack.c.bf16 %v305, %v304
  %v321 = vpack.c.bf16 %v307, %v306
  %v322 = vpack.c.bf16 %v309, %v308
  %v323 = vpack.c.bf16 %v311, %v310
  %v324 = vpack.c.bf16 %v313, %v312
  %v325 = vpack.c.bf16 %v315, %v314
  %v326 = vpack.c.bf16 %v317, %v316
  %v327 = vpack.c.bf16 %v319, %v318
  %v336 = vunpack.c.l.b16 %v320
  %v337 = vunpack.c.h.b16 %v320
  %v338 = vunpack.c.l.b16 %v321
  %v339 = vunpack.c.h.b16 %v321
  %v340 = vunpack.c.l.b16 %v322
  %v341 = vunpack.c.h.b16 %v322
  %v342 = vunpack.c.l.b16 %v323
  %v343 = vunpack.c.h.b16 %v323
  %v344 = vunpack.c.l.b16 %v324
  %v345 = vunpack.c.h.b16 %v324
  %v346 = vunpack.c.l.b16 %v325
  %v347 = vunpack.c.h.b16 %v325
  %v348 = vunpack.c.l.b16 %v326
  %v349 = vunpack.c.h.b16 %v326
  %v350 = vunpack.c.l.b16 %v327
  %v351 = vunpack.c.h.b16 %v327
  %v352 = vpack.c.b16 %v336, %v336
  %v353 = vpack.c.b16 %v337, %v337
  %v354 = vpack.c.b16 %v338, %v338
  %v355 = vpack.c.b16 %v339, %v339
  %v356 = vpack.c.b16 %v340, %v340
  %v357 = vpack.c.b16 %v341, %v341
  %v358 = vpack.c.b16 %v342, %v342
  %v359 = vpack.c.b16 %v343, %v343
  %v360 = vpack.c.b16 %v344, %v344
  %v361 = vpack.c.b16 %v345, %v345
  %v362 = vpack.c.b16 %v346, %v346
  %v363 = vpack.c.b16 %v347, %v347
  %v364 = vpack.c.b16 %v348, %v348
  %v365 = vpack.c.b16 %v349, %v349
  %v366 = vpack.c.b16 %v350, %v350
  %v367 = vpack.c.b16 %v351, %v351
  %384 = vst [vmem:[%s3] sm:$0xf] %v352
  %385 = vst [vmem:[%s3 + $0x4] sm:$0xf] %v353
  %386 = vst [vmem:[%s3 + $0x8] sm:$0xf] %v354
  %387 = vst [vmem:[%s3 + $0xc] sm:$0xf] %v355
  %388 = vst [vmem:[%s3 + $0x10] sm:$0xf] %v356
  %389 = vst [vmem:[%s3 + $0x14] sm:$0xf] %v357
  %390 = vst [vmem:[%s3 + $0x18] sm:$0xf] %v358
  %391 = vst [vmem:[%s3 + $0x1c] sm:$0xf] %v359
  %392 = vst [vmem:[%s3 + $0x20] sm:$0xf] %v360
  %393 = vst [vmem:[%s3 + $0x24] sm:$0xf] %v361
  %394 = vst [vmem:[%s3 + $0x28] sm:$0xf] %v362
  %395 = vst [vmem:[%s3 + $0x2c] sm:$0xf] %v363
  %396 = vst [vmem:[%s3 + $0x30] sm:$0xf] %v364
  %397 = vst [vmem:[%s3 + $0x34] sm:$0xf] %v365
  %398 = vst [vmem:[%s3 + $0x38] sm:$0xf] %v366
  %399 = vst [vmem:[%s3 + $0x3c] sm:$0xf] %v367
  // Predicated region
  $region14: #{forward.6} parent=0 // pred_check
    _
  $region15: #{forward.6} parent=0 // pred_check_branch
    %401 = sbr.rel (0) target = $region17
  $region16: #{forward.6} parent=0 // pred_region
    _
  $region17: #{forward.6} parent=0 // pred_fallthru
    _
  // Predicated region
  $region18: #{forward.6} parent=0 // pred_check
    _
  $region19: #{forward.6} parent=0 // pred_check_branch
    %403 = sbr.rel (0) target = $region21
  $region20: #{forward.6} parent=0 // pred_region
    _
  $region21: #{forward.6} parent=0 // pred_fallthru
    _

// kernel: forward.7
$region0: #{forward.7}
  #allocation0 [shape = 'u32[]', space=smem, size = 0x4, offset = 0x4, fixed_abs, tag = 'smem constant byte address 0x4 - core index']
  #allocation1 [shape = 'u32[144,128]{1,0:T(1,128)}', space=vmem, size = 0x12000, scoped, tag = 'internal scratch']
  %s0 = inlined_call_operand.vmem [shape: bf16[128,288], index: 0, kind: input, shape index: {}]
  %s1 = inlined_call_operand.vmem [shape: bf16[288,128], index: 1, kind: input, shape index: {}]
  %s2 = inlined_call_operand.vmem [shape: f32[1,128], index: 2, kind: input, shape index: {}]
  %s3 = inlined_call_operand.vmem [shape: bf16[128,16], index: 3, kind: input, shape index: {}]
  %s4 = inlined_call_operand.vmem [shape: bf16[16,128], index: 4, kind: input, shape index: {}]
  %s5 = inlined_call_operand.vmem [shape: f32[1,128], index: 5, kind: input, shape index: {}]
  %s6 = inlined_call_operand.hbm [shape: f32[128,128], index: 6, kind: output, shape index: {}]
  %s7 = sld [smem:[#allocation0]]
  $region34: #{forward.7} parent=0
    _
  %s9 = ssub.s32 1, %s7
  %s10 = scalar_select 0, %s9, %s7
  $region1: #{forward.7} parent=0
    #allocation2 [shape = 'u8[65536]{0}', space=vmem, size = 0x10000, scoped, tag = 'output window, operand 0, single buffered']
    #allocation3 [shape = 's32[1]{0}', space=sflag, size = 0x4, scoped, tag = 'scoped memory for forward.7']
    %11 = vsyncpa [#allocation3], 0
    // Predicated region
    $region2: #{forward.7} parent=1 // pred_check
      _
    $region3: #{forward.7} parent=1 // pred_check_branch
      %13 = sbr.rel (0) target = $region5
    $region4: #{forward.7} parent=1 // pred_region
      _
    $region5: #{forward.7} parent=1 // pred_fallthru
      _
    // Predicated region
    $region6: #{forward.7} parent=1 // pred_check
      _
    $region7: #{forward.7} parent=1 // pred_check_branch
      %15 = sbr.rel (0) target = $region9
    $region8: #{forward.7} parent=1 // pred_region
      _
    $region9: #{forward.7} parent=1 // pred_fallthru
      _
    // Predicated region
    $region10: #{forward.7} parent=1 // pred_check
      _
    $region11: #{forward.7} parent=1 // pred_check_branch
      %17 = sbr.rel (0) target = $region13
    $region12: #{forward.7} parent=1 // pred_region
      _
    $region13: #{forward.7} parent=1 // pred_fallthru
      _
    // Predicated region
    $region14: #{forward.7} parent=1 // pred_check
      _
    $region15: #{forward.7} parent=1 // pred_check_branch
      %19 = sbr.rel (0) target = $region17
    $region16: #{forward.7} parent=1 // pred_region
      _
    $region17: #{forward.7} parent=1 // pred_fallthru
      _
    // Predicated region
    $region18: #{forward.7} parent=1 // pred_check
      _
    $region19: #{forward.7} parent=1 // pred_check_branch
      %21 = sbr.rel (0) target = $region21
    $region20: #{forward.7} parent=1 // pred_region
      _
    $region21: #{forward.7} parent=1 // pred_fallthru
      _
    // Predicated region
    $region22: #{forward.7} parent=1 // pred_check
      _
    $region23: #{forward.7} parent=1 // pred_check_branch
      %23 = sbr.rel (0) target = $region25
    $region24: #{forward.7} parent=1 // pred_region
      _
    $region25: #{forward.7} parent=1 // pred_fallthru
      _
    %v25 = vld [vmem:[%s0] sm:$0xff]
    %v26 = vld [vmem:[%s0 + $0x8] sm:$0xf]
    %v27 = vld [vmem:[%s0 + $0xc] sm:$0xff]
    %v28 = vld [vmem:[%s0 + $0x14] sm:$0xf]
    %v29 = vld [vmem:[%s0 + $0x18] sm:$0xff]
    %v30 = vld [vmem:[%s0 + $0x20] sm:$0xf]
    %v31 = vld [vmem:[%s0 + $0x24] sm:$0xff]
    %v32 = vld [vmem:[%s0 + $0x2c] sm:$0xf]
    %v33 = vld [vmem:[%s0 + $0x30] sm:$0xff]
    %v34 = vld [vmem:[%s0 + $0x38] sm:$0xf]
    %v35 = vld [vmem:[%s0 + $0x3c] sm:$0xff]
    %v36 = vld [vmem:[%s0 + $0x44] sm:$0xf]
    %v37 = vld [vmem:[%s0 + $0x48] sm:$0xff]
    %v38 = vld [vmem:[%s0 + $0x50] sm:$0xf]
    %v39 = vld [vmem:[%s0 + $0x54] sm:$0xff]
    %v40 = vld [vmem:[%s0 + $0x5c] sm:$0xf]
    %v41 = vld [vmem:[%s0 + $0x60] sm:$0xff]
    %v42 = vld [vmem:[%s0 + $0x68] sm:$0xf]
    %v43 = vld [vmem:[%s0 + $0x6c] sm:$0xff]
    %v44 = vld [vmem:[%s0 + $0x74] sm:$0xf]
    %v45 = vld [vmem:[%s0 + $0x78] sm:$0xff]
    %v46 = vld [vmem:[%s0 + $0x80] sm:$0xf]
    %v47 = vld [vmem:[%s0 + $0x84] sm:$0xff]
    %v48 = vld [vmem:[%s0 + $0x8c] sm:$0xf]
    %v49 = vld [vmem:[%s0 + $0x90] sm:$0xff]
    %v50 = vld [vmem:[%s0 + $0x98] sm:$0xf]
    %v51 = vld [vmem:[%s0 + $0x9c] sm:$0xff]
    %v52 = vld [vmem:[%s0 + $0xa4] sm:$0xf]
    %v53 = vld [vmem:[%s0 + $0xa8] sm:$0xff]
    %v54 = vld [vmem:[%s0 + $0xb0] sm:$0xf]
    %v55 = vld [vmem:[%s0 + $0xb4] sm:$0xff]
    %v56 = vld [vmem:[%s0 + $0xbc] sm:$0xf]
    %v57 = vld [vmem:[%s1] sm:$0xf]
    %v58 = vld [vmem:[%s1 + $0x4] sm:$0xf]
    %v59 = vld [vmem:[%s1 + $0x8] sm:$0xf]
    %v60 = vld [vmem:[%s1 + $0xc] sm:$0xf]
    %v61 = vld [vmem:[%s1 + $0x10] sm:$0xf]
    %v62 = vld [vmem:[%s1 + $0x14] sm:$0xf]
    %v63 = vld [vmem:[%s1 + $0x18] sm:$0xf]
    %v64 = vld [vmem:[%s1 + $0x1c] sm:$0xf]
    %v65 = vld [vmem:[%s1 + $0x20] sm:$0xf]
    %v66 = vld [vmem:[%s1 + $0x24] sm:$0xf]
    %v67 = vld [vmem:[%s1 + $0x28] sm:$0xf]
    %v68 = vld [vmem:[%s1 + $0x2c] sm:$0xf]
    %v69 = vld [vmem:[%s1 + $0x30] sm:$0xf]
    %v70 = vld [vmem:[%s1 + $0x34] sm:$0xf]
    %v71 = vld [vmem:[%s1 + $0x38] sm:$0xf]
    %v72 = vld [vmem:[%s1 + $0x3c] sm:$0xf]
    %v73 = vld [vmem:[%s1 + $0x40] sm:$0xf]
    %v74 = vld [vmem:[%s1 + $0x44] sm:$0xf]
    %v75 = vld [vmem:[%s1 + $0x48] sm:$0xf]
    %v76 = vld [vmem:[%s1 + $0x4c] sm:$0xf]
    %v77 = vld [vmem:[%s1 + $0x50] sm:$0xf]
    %v78 = vld [vmem:[%s1 + $0x54] sm:$0xf]
    %v79 = vld [vmem:[%s1 + $0x58] sm:$0xf]
    %v80 = vld [vmem:[%s1 + $0x5c] sm:$0xf]
    %v81 = vld [vmem:[%s1 + $0x60] sm:$0xf]
    %v82 = vld [vmem:[%s1 + $0x64] sm:$0xf]
    %v83 = vld [vmem:[%s1 + $0x68] sm:$0xf]
    %v84 = vld [vmem:[%s1 + $0x6c] sm:$0xf]
    %v85 = vld [vmem:[%s1 + $0x70] sm:$0xf]
    %v86 = vld [vmem:[%s1 + $0x74] sm:$0xf]
    %v87 = vld [vmem:[%s1 + $0x78] sm:$0xf]
    %v88 = vld [vmem:[%s1 + $0x7c] sm:$0xf]
    %v89 = vld [vmem:[%s1 + $0x80] sm:$0xf]
    %v90 = vld [vmem:[%s1 + $0x84] sm:$0xf]
    %v91 = vld [vmem:[%s1 + $0x88] sm:$0xf]
    %v92 = vld [vmem:[%s1 + $0x8c] sm:$0xf]
    %v93 = vld [vmem:[%s2] sm:$0x1]
    %v95 = vlaneseq
    %v96 = vshrl.u32 %v95, 7
    %v97 = vsub.s32 0, %v96
    %v98 = vrot.slane %v93, %v97
    %v132 = vunpack.c.l.b16 %v25
    %v133 = vunpack.c.h.b16 %v25
    %v134 = vunpack.c.l.b16 %v26
    %v135 = vunpack.c.l.b16 %v27
    %v136 = vunpack.c.h.b16 %v27
    %v137 = vunpack.c.l.b16 %v28
    %v138 = vunpack.c.l.b16 %v29
    %v139 = vunpack.c.h.b16 %v29
    %v140 = vunpack.c.l.b16 %v30
    %v141 = vunpack.c.l.b16 %v31
    %v142 = vunpack.c.h.b16 %v31
    %v143 = vunpack.c.l.b16 %v32
    %v144 = vunpack.c.l.b16 %v33
    %v145 = vunpack.c.h.b16 %v33
    %v146 = vunpack.c.l.b16 %v34
    %v147 = vunpack.c.l.b16 %v35
    %v148 = vunpack.c.h.b16 %v35
    %v149 = vunpack.c.l.b16 %v36
    %v150 = vunpack.c.l.b16 %v37
    %v151 = vunpack.c.h.b16 %v37
    %v152 = vunpack.c.l.b16 %v38
    %v153 = vunpack.c.l.b16 %v39
    %v154 = vunpack.c.h.b16 %v39
    %v155 = vunpack.c.l.b16 %v40
    %v156 = vunpack.c.l.b16 %v41
    %v157 = vunpack.c.h.b16 %v41
    %v158 = vunpack.c.l.b16 %v42
    %v159 = vunpack.c.l.b16 %v43
    %v160 = vunpack.c.h.b16 %v43
    %v161 = vunpack.c.l.b16 %v44
    %v162 = vunpack.c.l.b16 %v45
    %v163 = vunpack.c.h.b16 %v45
    %v164 = vunpack.c.l.b16 %v46
    %v165 = vunpack.c.l.b16 %v47
    %v166 = vunpack.c.h.b16 %v47
    %v167 = vunpack.c.l.b16 %v48
    %v168 = vunpack.c.l.b16 %v49
    %v169 = vunpack.c.h.b16 %v49
    %v170 = vunpack.c.l.b16 %v50
    %v171 = vunpack.c.l.b16 %v51
    %v172 = vunpack.c.h.b16 %v51
    %v173 = vunpack.c.l.b16 %v52
    %v174 = vunpack.c.l.b16 %v53
    %v175 = vunpack.c.h.b16 %v53
    %v176 = vunpack.c.l.b16 %v54
    %v177 = vunpack.c.l.b16 %v55
    %v178 = vunpack.c.h.b16 %v55
    %v179 = vunpack.c.l.b16 %v56
    %v180 = vpack.c.b16 %v135, %v132
    %v181 = vpack.c.b16 %v136, %v133
    %v182 = vpack.c.b16 %v137, %v134
    %v183 = vpack.c.b16 %v141, %v138
    %v184 = vpack.c.b16 %v142, %v139
    %v185 = vpack.c.b16 %v143, %v140
    %v186 = vpack.c.b16 %v147, %v144
    %v187 = vpack.c.b16 %v148, %v145
    %v188 = vpack.c.b16 %v149, %v146
    %v189 = vpack.c.b16 %v153, %v150
    %v190 = vpack.c.b16 %v154, %v151
    %v191 = vpack.c.b16 %v155, %v152
    %v192 = vpack.c.b16 %v159, %v156
    %v193 = vpack.c.b16 %v160, %v157
    %v194 = vpack.c.b16 %v161, %v158
    %v195 = vpack.c.b16 %v165, %v162
    %v196 = vpack.c.b16 %v166, %v163
    %v197 = vpack.c.b16 %v167, %v164
    %v198 = vpack.c.b16 %v171, %v168
    %v199 = vpack.c.b16 %v172, %v169
    %v200 = vpack.c.b16 %v173, %v170
    %v201 = vpack.c.b16 %v177, %v174
    %v202 = vpack.c.b16 %v178, %v175
    %v203 = vpack.c.b16 %v179, %v176
    %v256 = vunpack.c.l.b16 %v57
    %v257 = vunpack.c.l.b16 %v58
    %v258 = vunpack.c.l.b16 %v59
    %v259 = vunpack.c.l.b16 %v60
    %v260 = vunpack.c.l.b16 %v61
    %v261 = vunpack.c.l.b16 %v62
    %v262 = vunpack.c.l.b16 %v63
    %v263 = vunpack.c.l.b16 %v64
    %v264 = vunpack.c.l.b16 %v65
    %v265 = vunpack.c.l.b16 %v66
    %v266 = vunpack.c.l.b16 %v67
    %v267 = vunpack.c.l.b16 %v68
    %v268 = vunpack.c.l.b16 %v69
    %v269 = vunpack.c.l.b16 %v70
    %v270 = vunpack.c.l.b16 %v71
    %v271 = vunpack.c.l.b16 %v72
    %v272 = vunpack.c.l.b16 %v73
    %v273 = vunpack.c.l.b16 %v74
    %v274 = vunpack.c.l.b16 %v75
    %v275 = vunpack.c.l.b16 %v76
    %v276 = vunpack.c.l.b16 %v77
    %v277 = vunpack.c.l.b16 %v78
    %v278 = vunpack.c.l.b16 %v79
    %v279 = vunpack.c.l.b16 %v80
    %v280 = vunpack.c.l.b16 %v81
    %v281 = vunpack.c.l.b16 %v82
    %v282 = vunpack.c.l.b16 %v83
    %v283 = vunpack.c.l.b16 %v84
    %v284 = vunpack.c.l.b16 %v85
    %v285 = vunpack.c.l.b16 %v86
    %v286 = vunpack.c.l.b16 %v87
    %v287 = vunpack.c.l.b16 %v88
    %v288 = vunpack.c.l.b16 %v89
    %v289 = vunpack.c.l.b16 %v90
    %v290 = vunpack.c.l.b16 %v91
    %v291 = vunpack.c.l.b16 %v92
    %v292 = vpack.c.b16 %v257, %v256
    %v293 = vpack.c.b16 %v259, %v258
    %v294 = vpack.c.b16 %v261, %v260
    %v295 = vpack.c.b16 %v263, %v262
    %v296 = vpack.c.b16 %v265, %v264
    %v297 = vpack.c.b16 %v267, %v266
    %v298 = vpack.c.b16 %v269, %v268
    %v299 = vpack.c.b16 %v271, %v270
    %v300 = vpack.c.b16 %v273, %v272
    %v301 = vpack.c.b16 %v275, %v274
    %v302 = vpack.c.b16 %v277, %v276
    %v303 = vpack.c.b16 %v279, %v278
    %v304 = vpack.c.b16 %v281, %v280
    %v305 = vpack.c.b16 %v283, %v282
    %v306 = vpack.c.b16 %v285, %v284
    %v307 = vpack.c.b16 %v287, %v286
    %v308 = vpack.c.b16 %v289, %v288
    %v309 = vpack.c.b16 %v291, %v290
    %vm328 = vcmask 261120
    %v330 = vsel %vm328, %v182, 0
    %v333 = vsel %vm328, %v185, 0
    %v336 = vsel %vm328, %v188, 0
    %v339 = vsel %vm328, %v191, 0
    %v342 = vsel %vm328, %v194, 0
    %v345 = vsel %vm328, %v197, 0
    %v348 = vsel %vm328, %v200, 0
    %v351 = vsel %vm328, %v203, 0
    %353 = vmatprep.subr.bf16.mxu0 0
    %354 = vmatpush1.bf16.msra.mxu0 %v292
    %355 = vmatprep.subr.bf16.mxu0 0
    %356 = vmatpush1.bf16.msra.mxu0 %v293
    %357 = vmatprep.subr.bf16.mxu0 0
    %358 = vmatpush1.bf16.msra.mxu0 %v294
    %359 = vmatprep.subr.bf16.mxu0 0
    %360 = vmatpush1.bf16.msra.mxu0 %v295
    %361 = vmatprep.subr.bf16.mxu0 0
    %362 = vmatpush1.bf16.msra.mxu0 %v296
    %363 = vmatprep.subr.bf16.mxu0 0
    %364 = vmatpush1.bf16.msra.mxu0 %v297
    %365 = vmatprep.subr.bf16.mxu0 0
    %366 = vmatpush1.bf16.msra.mxu0 %v298
    %367 = vmatprep.subr.bf16.mxu0 0
    %368 = vmatpush1.bf16.msra.mxu0 %v299
    %369 = vmatprep.subr.bf16.mxu0 0
    %370 = vmatpush1.bf16.msra.mxu0 %v300
    %371 = vmatprep.subr.bf16.mxu0 0
    %372 = vmatpush1.bf16.msra.mxu0 %v301
    %373 = vmatprep.subr.bf16.mxu0 0
    %374 = vmatpush1.bf16.msra.mxu0 %v302
    %375 = vmatprep.subr.bf16.mxu0 0
    %376 = vmatpush1.bf16.msra.mxu0 %v303
    %377 = vmatprep.subr.bf16.mxu0 0
    %378 = vmatpush1.bf16.msra.mxu0 %v304
    %379 = vmatprep.subr.bf16.mxu0 0
    %380 = vmatpush1.bf16.msra.mxu0 %v305
    %381 = vmatprep.subr.bf16.mxu0 0
    %382 = vmatpush1.bf16.msra.mxu0 %v306
    %383 = vmatprep.subr.bf16.mxu0 0
    %384 = vmatpush1.bf16.msra.mxu0 %v307
    %385 = vmatprep.mubr.bf16.mxu0 %v181
    %386 = vmatmul.mubr.bf16.gmra.mrb[0].mxu0 %v180
    %v387 = vpop.f32.mrb[0].mxu0
    %v388 = vadd.f32 %v98, %v387
    %v389 = vpop.f32.mrb[0].mxu0
    %v390 = vpop.f32.mrb[0].mxu0
    %v391 = vadd.f32 %v98, %v390
    %v392 = vpop.f32.mrb[0].mxu0
    %393 = vmatprep.mubr.bf16.mxu0 %v184
    %394 = vmatmul.mubr.bf16.gmra.mrb[0].mxu0 %v183
    %v395 = vpop.f32.mrb[0].mxu0
    %v396 = vadd.f32 %v98, %v395
    %v397 = vpop.f32.mrb[0].mxu0
    %v398 = vpop.f32.mrb[0].mxu0
    %v399 = vadd.f32 %v98, %v398
    %v400 = vpop.f32.mrb[0].mxu0
    %401 = vmatprep.mubr.bf16.mxu0 %v187
    %402 = vmatmul.mubr.bf16.gmra.mrb[0].mxu0 %v186
    %v403 = vpop.f32.mrb[0].mxu0
    %v404 = vadd.f32 %v98, %v403
    %v405 = vpop.f32.mrb[0].mxu0
    %v406 = vpop.f32.mrb[0].mxu0
    %v407 = vadd.f32 %v98, %v406
    %v408 = vpop.f32.mrb[0].mxu0
    %409 = vmatprep.mubr.bf16.mxu0 %v190
    %410 = vmatmul.mubr.bf16.gmra.mrb[0].mxu0 %v189
    %v411 = vpop.f32.mrb[0].mxu0
    %v412 = vadd.f32 %v98, %v411
    %v413 = vpop.f32.mrb[0].mxu0
    %v414 = vpop.f32.mrb[0].mxu0
    %v415 = vadd.f32 %v98, %v414
    %v416 = vpop.f32.mrb[0].mxu0
    %417 = vmatprep.mubr.bf16.mxu0 %v193
    %418 = vmatmul.mubr.bf16.gmra.mrb[0].mxu0 %v192
    %v419 = vpop.f32.mrb[0].mxu0
    %v420 = vadd.f32 %v98, %v419
    %v421 = vpop.f32.mrb[0].mxu0
    %v422 = vpop.f32.mrb[0].mxu0
    %v423 = vadd.f32 %v98, %v422
    %v424 = vpop.f32.mrb[0].mxu0
    %425 = vmatprep.mubr.bf16.mxu0 %v196
    %426 = vmatmul.mubr.bf16.gmra.mrb[0].mxu0 %v195
    %v427 = vpop.f32.mrb[0].mxu0
    %v428 = vadd.f32 %v98, %v427
    %v429 = vpop.f32.mrb[0].mxu0
    %v430 = vpop.f32.mrb[0].mxu0
    %v431 = vadd.f32 %v98, %v430
    %v432 = vpop.f32.mrb[0].mxu0
    %433 = vmatprep.mubr.bf16.mxu0 %v199
    %434 = vmatmul.mubr.bf16.gmra.mrb[0].mxu0 %v198
    %v435 = vpop.f32.mrb[0].mxu0
    %v436 = vadd.f32 %v98, %v435
    %v437 = vpop.f32.mrb[0].mxu0
    %v438 = vpop.f32.mrb[0].mxu0
    %v439 = vadd.f32 %v98, %v438
    %v440 = vpop.f32.mrb[0].mxu0
    %441 = vmatprep.mubr.bf16.mxu0 %v202
    %442 = vmatmul.mubr.bf16.gmra.mrb[0].mxu0 %v201
    %v443 = vpop.f32.mrb[0].mxu0
    %v444 = vadd.f32 %v98, %v443
    %v445 = vpop.f32.mrb[0].mxu0
    %v446 = vpop.f32.mrb[0].mxu0
    %v447 = vadd.f32 %v98, %v446
    %v448 = vpop.f32.mrb[0].mxu0
    %449 = vdwg.mxu0
    %450 = vmatprep.subr.bf16.mxu0 0
    %451 = vmatpush1.bf16.msra.mxu0 %v308
    %452 = vmatprep.subr.bf16.mxu0 0
    %453 = vmatpush1.bf16.msra.mxu0 %v309
    %454 = vmatprep.subr.bf16.mxu0 0
    %455 = vmatpush1.bf16.msra.mxu0 0
    %456 = vmatprep.subr.bf16.mxu0 0
    %457 = vmatpush1.bf16.msra.mxu0 0
    %458 = vmatprep.subr.bf16.mxu0 0
    %459 = vmatpush1.bf16.msra.mxu0 0
    %460 = vmatprep.subr.bf16.mxu0 0
    %461 = vmatpush1.bf16.msra.mxu0 0
    %462 = vmatprep.subr.bf16.mxu0 0
    %463 = vmatpush1.bf16.msra.mxu0 0
    %464 = vmatprep.subr.bf16.mxu0 0
    %465 = vmatpush1.bf16.msra.mxu0 0
    %466 = vmatprep.subr.bf16.mxu0 0
    %467 = vmatpush1.bf16.msra.mxu0 0
    %468 = vmatprep.subr.bf16.mxu0 0
    %469 = vmatpush1.bf16.msra.mxu0 0
    %470 = vmatprep.subr.bf16.mxu0 0
    %471 = vmatpush1.bf16.msra.mxu0 0
    %472 = vmatprep.subr.bf16.mxu0 0
    %473 = vmatpush1.bf16.msra.mxu0 0
    %474 = vmatprep.subr.bf16.mxu0 0
    %475 = vmatpush1.bf16.msra.mxu0 0
    %476 = vmatprep.subr.bf16.mxu0 0
    %477 = vmatpush1.bf16.msra.mxu0 0
    %478 = vmatprep.subr.bf16.mxu0 0
    %479 = vmatpush1.bf16.msra.mxu0 0
    %480 = vmatprep.subr.bf16.mxu0 0
    %481 = vmatpush1.bf16.msra.mxu0 0
    %482 = vmatprep.mubr.bf16.mxu0 0
    %483 = vmatmul.mubr.bf16.gmra.mrb[0].mxu0 %v330
    %v484 = vpop.f32.mrb[0].mxu0
    %v485 = vadd.f32 %v388, %v484
    %v486 = vpop.f32.mrb[0].mxu0
    %v487 = vpop.f32.mrb[0].mxu0
    %v488 = vadd.f32 %v391, %v487
    %v489 = vpop.f32.mrb[0].mxu0
    %490 = vmatprep.mubr.bf16.mxu0 0
    %491 = vmatmul.mubr.bf16.gmra.mrb[0].mxu0 %v333
    %v492 = vpop.f32.mrb[0].mxu0
    %v493 = vadd.f32 %v396, %v492
    %v494 = vpop.f32.mrb[0].mxu0
    %v495 = vpop.f32.mrb[0].mxu0
    %v496 = vadd.f32 %v399, %v495
    %v497 = vpop.f32.mrb[0].mxu0
    %498 = vmatprep.mubr.bf16.mxu0 0
    %499 = vmatmul.mubr.bf16.gmra.mrb[0].mxu0 %v336
    %v500 = vpop.f32.mrb[0].mxu0
    %v501 = vadd.f32 %v404, %v500
    %v502 = vpop.f32.mrb[0].mxu0
    %v503 = vpop.f32.mrb[0].mxu0
    %v504 = vadd.f32 %v407, %v503
    %v505 = vpop.f32.mrb[0].mxu0
    %506 = vmatprep.mubr.bf16.mxu0 0
    %507 = vmatmul.mubr.bf16.gmra.mrb[0].mxu0 %v339
    %v508 = vpop.f32.mrb[0].mxu0
    %v509 = vadd.f32 %v412, %v508
    %v510 = vpop.f32.mrb[0].mxu0
    %v511 = vpop.f32.mrb[0].mxu0
    %v512 = vadd.f32 %v415, %v511
    %v513 = vpop.f32.mrb[0].mxu0
    %514 = vmatprep.mubr.bf16.mxu0 0
    %515 = vmatmul.mubr.bf16.gmra.mrb[0].mxu0 %v342
    %v516 = vpop.f32.mrb[0].mxu0
    %v517 = vadd.f32 %v420, %v516
    %v518 = vpop.f32.mrb[0].mxu0
    %v519 = vpop.f32.mrb[0].mxu0
    %v520 = vadd.f32 %v423, %v519
    %v521 = vpop.f32.mrb[0].mxu0
    %522 = vmatprep.mubr.bf16.mxu0 0
    %523 = vmatmul.mubr.bf16.gmra.mrb[0].mxu0 %v345
    %v524 = vpop.f32.mrb[0].mxu0
    %v525 = vadd.f32 %v428, %v524
    %v526 = vpop.f32.mrb[0].mxu0
    %v527 = vpop.f32.mrb[0].mxu0
    %v528 = vadd.f32 %v431, %v527
    %v529 = vpop.f32.mrb[0].mxu0
    %530 = vmatprep.mubr.bf16.mxu0 0
    %531 = vmatmul.mubr.bf16.gmra.mrb[0].mxu0 %v348
    %v532 = vpop.f32.mrb[0].mxu0
    %v533 = vadd.f32 %v436, %v532
    %v534 = vpop.f32.mrb[0].mxu0
    %v535 = vpop.f32.mrb[0].mxu0
    %v536 = vadd.f32 %v439, %v535
    %v537 = vpop.f32.mrb[0].mxu0
    %538 = vmatprep.mubr.bf16.mxu0 0
    %539 = vmatmul.mubr.bf16.gmra.mrb[0].mxu0 %v351
    %v540 = vpop.f32.mrb[0].mxu0
    %v541 = vadd.f32 %v444, %v540
    %v542 = vpop.f32.mrb[0].mxu0
    %v543 = vpop.f32.mrb[0].mxu0
    %v544 = vadd.f32 %v447, %v543
    %v545 = vpop.f32.mrb[0].mxu0
    %546 = vdwg.mxu0
    %v547 = vld [vmem:[%s3] sm:$0xf]
    %v548 = vld [vmem:[%s3 + $0x4] sm:$0xf]
    %v549 = vld [vmem:[%s3 + $0x8] sm:$0xf]
    %v550 = vld [vmem:[%s3 + $0xc] sm:$0xf]
    %v551 = vld [vmem:[%s3 + $0x10] sm:$0xf]
    %v552 = vld [vmem:[%s3 + $0x14] sm:$0xf]
    %v553 = vld [vmem:[%s3 + $0x18] sm:$0xf]
    %v554 = vld [vmem:[%s3 + $0x1c] sm:$0xf]
    %v555 = vld [vmem:[%s3 + $0x20] sm:$0xf]
    %v556 = vld [vmem:[%s3 + $0x24] sm:$0xf]
    %v557 = vld [vmem:[%s3 + $0x28] sm:$0xf]
    %v558 = vld [vmem:[%s3 + $0x2c] sm:$0xf]
    %v559 = vld [vmem:[%s3 + $0x30] sm:$0xf]
    %v560 = vld [vmem:[%s3 + $0x34] sm:$0xf]
    %v561 = vld [vmem:[%s3 + $0x38] sm:$0xf]
    %v562 = vld [vmem:[%s3 + $0x3c] sm:$0xf]
    %v563 = vld [vmem:[%s4] sm:$0xf]
    %v564 = vld [vmem:[%s4 + $0x4] sm:$0xf]
    %v581 = vunpack.c.l.b16 %v547
    %v582 = vunpack.c.l.b16 %v548
    %v583 = vunpack.c.l.b16 %v549
    %v584 = vunpack.c.l.b16 %v550
    %v585 = vunpack.c.l.b16 %v551
    %v586 = vunpack.c.l.b16 %v552
    %v587 = vunpack.c.l.b16 %v553
    %v588 = vunpack.c.l.b16 %v554
    %v589 = vunpack.c.l.b16 %v555
    %v590 = vunpack.c.l.b16 %v556
    %v591 = vunpack.c.l.b16 %v557
    %v592 = vunpack.c.l.b16 %v558
    %v593 = vunpack.c.l.b16 %v559
    %v594 = vunpack.c.l.b16 %v560
    %v595 = vunpack.c.l.b16 %v561
    %v596 = vunpack.c.l.b16 %v562
    %v597 = vpack.c.b16 %v582, %v581
    %v598 = vpack.c.b16 %v584, %v583
    %v599 = vpack.c.b16 %v586, %v585
    %v600 = vpack.c.b16 %v588, %v587
    %v601 = vpack.c.b16 %v590, %v589
    %v602 = vpack.c.b16 %v592, %v591
    %v603 = vpack.c.b16 %v594, %v593
    %v604 = vpack.c.b16 %v596, %v595
    %v607 = vunpack.c.l.b16 %v563
    %v608 = vunpack.c.l.b16 %v564
    %v609 = vpack.c.b16 %v608, %v607
    %vm611 = vcmask 130048
    %v613 = vsel %vm611, %v597, 0
    %v616 = vsel %vm611, %v598, 0
    %v619 = vsel %vm611, %v599, 0
    %v622 = vsel %vm611, %v600, 0
    %v625 = vsel %vm611, %v601, 0
    %v628 = vsel %vm611, %v602, 0
    %v631 = vsel %vm611, %v603, 0
    %v634 = vsel %vm611, %v604, 0
    %636 = vmatprep.subr.bf16.mxu0 0
    %637 = vmatpush1.bf16.msra.mxu0 %v609
    %638 = vmatprep.subr.bf16.mxu0 0
    %639 = vmatpush1.bf16.msra.mxu0 0
    %640 = vmatprep.subr.bf16.mxu0 0
    %641 = vmatpush1.bf16.msra.mxu0 0
    %642 = vmatprep.subr.bf16.mxu0 0
    %643 = vmatpush1.bf16.msra.mxu0 0
    %644 = vmatprep.subr.bf16.mxu0 0
    %645 = vmatpush1.bf16.msra.mxu0 0
    %646 = vmatprep.subr.bf16.mxu0 0
    %647 = vmatpush1.bf16.msra.mxu0 0
    %648 = vmatprep.subr.bf16.mxu0 0
    %649 = vmatpush1.bf16.msra.mxu0 0
    %650 = vmatprep.subr.bf16.mxu0 0
    %651 = vmatpush1.bf16.msra.mxu0 0
    %652 = vmatprep.subr.bf16.mxu0 0
    %653 = vmatpush1.bf16.msra.mxu0 0
    %654 = vmatprep.subr.bf16.mxu0 0
    %655 = vmatpush1.bf16.msra.mxu0 0
    %656 = vmatprep.subr.bf16.mxu0 0
    %657 = vmatpush1.bf16.msra.mxu0 0
    %658 = vmatprep.subr.bf16.mxu0 0
    %659 = vmatpush1.bf16.msra.mxu0 0
    %660 = vmatprep.subr.bf16.mxu0 0
    %661 = vmatpush1.bf16.msra.mxu0 0
    %662 = vmatprep.subr.bf16.mxu0 0
    %663 = vmatpush1.bf16.msra.mxu0 0
    %664 = vmatprep.subr.bf16.mxu0 0
    %665 = vmatpush1.bf16.msra.mxu0 0
    %666 = vmatprep.subr.bf16.mxu0 0
    %667 = vmatpush1.bf16.msra.mxu0 0
    %668 = vmatprep.mubr.bf16.mxu0 0
    %669 = vmatmul.mubr.bf16.gmra.mrb[0].mxu0 %v613
    %v670 = vpop.f32.mrb[0].mxu0
    %v671 = vadd.f32 0.0, %v670
    %v672 = vpop.f32.mrb[0].mxu0
    %v673 = vpop.f32.mrb[0].mxu0
    %v674 = vadd.f32 0.0, %v673
    %v675 = vpop.f32.mrb[0].mxu0
    %676 = vmatprep.mubr.bf16.mxu0 0
    %677 = vmatmul.mubr.bf16.gmra.mrb[0].mxu0 %v616
    %v678 = vpop.f32.mrb[0].mxu0
    %v679 = vadd.f32 0.0, %v678
    %v680 = vpop.f32.mrb[0].mxu0
    %v681 = vpop.f32.mrb[0].mxu0
    %v682 = vadd.f32 0.0, %v681
    %v683 = vpop.f32.mrb[0].mxu0
    %684 = vmatprep.mubr.bf16.mxu0 0
    %685 = vmatmul.mubr.bf16.gmra.mrb[0].mxu0 %v619
    %v686 = vpop.f32.mrb[0].mxu0
    %v687 = vadd.f32 0.0, %v686
    %v688 = vpop.f32.mrb[0].mxu0
    %v689 = vpop.f32.mrb[0].mxu0
    %v690 = vadd.f32 0.0, %v689
    %v691 = vpop.f32.mrb[0].mxu0
    %692 = vmatprep.mubr.bf16.mxu0 0
    %693 = vmatmul.mubr.bf16.gmra.mrb[0].mxu0 %v622
    %v694 = vpop.f32.mrb[0].mxu0
    %v695 = vadd.f32 0.0, %v694
    %v696 = vpop.f32.mrb[0].mxu0
    %v697 = vpop.f32.mrb[0].mxu0
    %v698 = vadd.f32 0.0, %v697
    %v699 = vpop.f32.mrb[0].mxu0
    %700 = vmatprep.mubr.bf16.mxu0 0
    %701 = vmatmul.mubr.bf16.gmra.mrb[0].mxu0 %v625
    %v702 = vpop.f32.mrb[0].mxu0
    %v703 = vadd.f32 0.0, %v702
    %v704 = vpop.f32.mrb[0].mxu0
    %v705 = vpop.f32.mrb[0].mxu0
    %v706 = vadd.f32 0.0, %v705
    %v707 = vpop.f32.mrb[0].mxu0
    %708 = vmatprep.mubr.bf16.mxu0 0
    %709 = vmatmul.mubr.bf16.gmra.mrb[0].mxu0 %v628
    %v710 = vpop.f32.mrb[0].mxu0
    %v711 = vadd.f32 0.0, %v710
    %v712 = vpop.f32.mrb[0].mxu0
    %v713 = vpop.f32.mrb[0].mxu0
    %v714 = vadd.f32 0.0, %v713
    %v715 = vpop.f32.mrb[0].mxu0
    %716 = vmatprep.mubr.bf16.mxu0 0
    %717 = vmatmul.mubr.bf16.gmra.mrb[0].mxu0 %v631
    %v718 = vpop.f32.mrb[0].mxu0
    %v719 = vadd.f32 0.0, %v718
    %v720 = vpop.f32.mrb[0].mxu0
    %v721 = vpop.f32.mrb[0].mxu0
    %v722 = vadd.f32 0.0, %v721
    %v723 = vpop.f32.mrb[0].mxu0
    %724 = vmatprep.mubr.bf16.mxu0 0
    %725 = vmatmul.mubr.bf16.gmra.mrb[0].mxu0 %v634
    %v726 = vpop.f32.mrb[0].mxu0
    %v727 = vadd.f32 0.0, %v726
    %v728 = vpop.f32.mrb[0].mxu0
    %v729 = vpop.f32.mrb[0].mxu0
    %v730 = vadd.f32 0.0, %v729
    %v731 = vpop.f32.mrb[0].mxu0
    %732 = vdwg.mxu0
    %v733 = vadd.f32 %v485, %v671
    %v734 = vadd.f32 %v488, %v674
    %v735 = vadd.f32 %v493, %v679
    %v736 = vadd.f32 %v496, %v682
    %v737 = vadd.f32 %v501, %v687
    %v738 = vadd.f32 %v504, %v690
    %v739 = vadd.f32 %v509, %v695
    %v740 = vadd.f32 %v512, %v698
    %v741 = vadd.f32 %v517, %v703
    %v742 = vadd.f32 %v520, %v706
    %v743 = vadd.f32 %v525, %v711
    %v744 = vadd.f32 %v528, %v714
    %v745 = vadd.f32 %v533, %v719
    %v746 = vadd.f32 %v536, %v722
    %v747 = vadd.f32 %v541, %v727
    %v748 = vadd.f32 %v544, %v730
    %v749 = vld [vmem:[%s5] sm:$0x1]
    %v751 = vlaneseq
    %v752 = vshrl.u32 %v751, 7
    %v753 = vsub.s32 0, %v752
    %v754 = vrot.slane %v749, %v753
    %v756 = vadd.f32 %v733, %v754
    %v757 = vadd.f32 %v734, %v754
    %v758 = vadd.f32 %v735, %v754
    %v759 = vadd.f32 %v736, %v754
    %v760 = vadd.f32 %v737, %v754
    %v761 = vadd.f32 %v738, %v754
    %v762 = vadd.f32 %v739, %v754
    %v763 = vadd.f32 %v740, %v754
    %v764 = vadd.f32 %v741, %v754
    %v765 = vadd.f32 %v742, %v754
    %v766 = vadd.f32 %v743, %v754
    %v767 = vadd.f32 %v744, %v754
    %v768 = vadd.f32 %v745, %v754
    %v769 = vadd.f32 %v746, %v754
    %v770 = vadd.f32 %v747, %v754
    %v771 = vadd.f32 %v748, %v754
    %v772 = vmax.f32 %v756, 0.0
    %v773 = vmax.f32 %v757, 0.0
    %v774 = vmax.f32 %v758, 0.0
    %v775 = vmax.f32 %v759, 0.0
    %v776 = vmax.f32 %v760, 0.0
    %v777 = vmax.f32 %v761, 0.0
    %v778 = vmax.f32 %v762, 0.0
    %v779 = vmax.f32 %v763, 0.0
    %v780 = vmax.f32 %v764, 0.0
    %v781 = vmax.f32 %v765, 0.0
    %v782 = vmax.f32 %v766, 0.0
    %v783 = vmax.f32 %v767, 0.0
    %v784 = vmax.f32 %v768, 0.0
    %v785 = vmax.f32 %v769, 0.0
    %v786 = vmax.f32 %v770, 0.0
    %v787 = vmax.f32 %v771, 0.0
    %788 = vst [vmem:[#allocation2] sm:$0xff] %v772
    %789 = vst [vmem:[#allocation2 + $0x8] sm:$0xff] %v773
    %790 = vst [vmem:[#allocation2 + $0x10] sm:$0xff] %v774
    %791 = vst [vmem:[#allocation2 + $0x18] sm:$0xff] %v775
    %792 = vst [vmem:[#allocation2 + $0x20] sm:$0xff] %v776
    %793 = vst [vmem:[#allocation2 + $0x28] sm:$0xff] %v777
    %794 = vst [vmem:[#allocation2 + $0x30] sm:$0xff] %v778
    %795 = vst [vmem:[#allocation2 + $0x38] sm:$0xff] %v779
    %796 = vst [vmem:[#allocation2 + $0x40] sm:$0xff] %v780
    %797 = vst [vmem:[#allocation2 + $0x48] sm:$0xff] %v781
    %798 = vst [vmem:[#allocation2 + $0x50] sm:$0xff] %v782
    %799 = vst [vmem:[#allocation2 + $0x58] sm:$0xff] %v783
    %800 = vst [vmem:[#allocation2 + $0x60] sm:$0xff] %v784
    %801 = vst [vmem:[#allocation2 + $0x68] sm:$0xff] %v785
    %802 = vst [vmem:[#allocation2 + $0x70] sm:$0xff] %v786
    %803 = vst [vmem:[#allocation2 + $0x78] sm:$0xff] %v787
    // Predicated region
    $region26: #{forward.7} parent=1 // pred_check
      _
    $region27: #{forward.7} parent=1 // pred_check_branch
      %805 = sbr.rel (0) target = $region29
    $region28: #{forward.7} parent=1 // pred_region
      %s807 = ssub.s32 2048, 2048
      %808 = vsyncadd [#allocation3], %s807
      %s809 = sshll.u32 [#allocation2], 4
      %s810 = int_to_ptr.vmem [resolvable:$true] %s809
      %815 = dma.vmem_to_hbm [thread:$0]  %s810, 2048, %s6, [#allocation3], 128, 128, 8
    $region29: #{forward.7} parent=1 // pred_fallthru
      _
    // Predicated region
    $region30: #{forward.7} parent=1 // pred_check
      _
    $region31: #{forward.7} parent=1 // pred_check_branch
      %817 = sbr.rel (0) target = $region33
    $region32: #{forward.7} parent=1 // pred_region
      %818 = dma.done [#allocation3], 2048
    $region33: #{forward.7} parent=1 // pred_fallthru
      _
    %819 = vsyncpa [#allocation3], 1

</llo_original>
